<compile_context>
chip_gen: v6e
topology: v6e:2x2x1
jax: 0.10.0
libtpu: 0.0.40
codegen_flags: <defaults>
</compile_context>

<pallas_src>
import math
import jax
import jax.numpy as jnp
from jax import lax
from jax.experimental import pallas as pl

# ---- model config (small, consistent with the module) ----
B = 2          # batch
S = 8          # sequence length
D = 32         # d_model
H = 4          # num_heads
HD = D // H    # head dim
DFF = 64       # d_ff (module default is 512; small here)
EPS = 1e-5     # nn.LayerNorm default

BS = B * S     # flattened batch*seq rows
HBS = H * BS   # head-replicated score columns


def transformer_block_kernel(
    x_ref,                              # (BS, D)
    wq_ref, bq_ref,                     # (D, D), (1, D)   pre-transposed, Q pre-scaled
    wk_ref, bk_ref,                     # (D, D), (1, D)
    wv_ref, bv_ref,                     # (D, D), (1, D)
    wo_ref, bo_ref,                     # (D, D), (1, D)
    ln1_w_ref, ln1_b_ref,               # (1, D), (1, D)
    w1_ref, b1_ref,                     # (D, DFF), (1, DFF)
    w2_ref, b2_ref,                     # (DFF, D), (1, D)
    ln2_w_ref, ln2_b_ref,               # (1, D), (1, D)
    bias_ref,                           # (BS, HBS)  0 / -1e30 cross-batch additive bias
    hmask_t_ref,                        # (D, HBS)   head mask for replicated K^T
    hmask_ref,                          # (HBS, D)   head mask for replicated V
    sum_mat_ref,                        # (HBS, HBS) per-head block-sum matrix
    o_ref,                              # (BS, D)
):
    x = x_ref[...].astype(jnp.float32)                                    # (BS, D)

    # ---- Q / K / V projections (separate matmuls: no sub-128-lane slicing) ----
    q = jnp.dot(x, wq_ref[...], preferred_element_type=jnp.float32) + bq_ref[...]
    k = jnp.dot(x, wk_ref[...], preferred_element_type=jnp.float32) + bk_ref[...]
    v = jnp.dot(x, wv_ref[...], preferred_element_type=jnp.float32) + bv_ref[...]

    # ---- head-major replication; K pre-transposed so every matmul is native MXU layout ----
    k_rep_t = jnp.tile(k.T, (1, H)) * hmask_t_ref[...]                    # (D, HBS)
    v_rep = jnp.tile(v, (H, 1)) * hmask_ref[...]                          # (HBS, D)

    # ---- all heads & batches of attention in 3 matmuls ----
    s = jnp.dot(q, k_rep_t, preferred_element_type=jnp.float32) + bias_ref[...]  # (BS, HBS)
    s = s - jnp.max(s, axis=-1, keepdims=True)        # per-row shift (softmax-invariant per head)
    e = jnp.exp(s)                                    # cross-batch lanes -> exactly 0
    denom = jnp.dot(e, sum_mat_ref[...], preferred_element_type=jnp.float32)
    p = e * pl.reciprocal(denom, approx=True)
    attn = jnp.dot(p, v_rep, preferred_element_type=jnp.float32)          # (BS, D), heads concatenated

    attn = jnp.dot(attn, wo_ref[...], preferred_element_type=jnp.float32) + bo_ref[...]

    # ---- residual + LayerNorm1 ----
    h1 = x + attn
    mu1 = jnp.mean(h1, axis=-1, keepdims=True)
    var1 = jnp.mean((h1 - mu1) ** 2, axis=-1, keepdims=True)
    h1n = (h1 - mu1) * lax.rsqrt(var1 + EPS) * ln1_w_ref[...] + ln1_b_ref[...]

    # ---- feed-forward ----
    f = jnp.dot(h1n, w1_ref[...], preferred_element_type=jnp.float32) + b1_ref[...]
    f = jnp.maximum(f, 0.0)
    f = jnp.dot(f, w2_ref[...], preferred_element_type=jnp.float32) + b2_ref[...]

    # ---- residual + LayerNorm2 ----
    h2 = h1n + f
    mu2 = jnp.mean(h2, axis=-1, keepdims=True)
    var2 = jnp.mean((h2 - mu2) ** 2, axis=-1, keepdims=True)
    h2n = (h2 - mu2) * lax.rsqrt(var2 + EPS) * ln2_w_ref[...] + ln2_b_ref[...]

    o_ref[...] = h2n.astype(o_ref.dtype)


def prepare_params(params):
    """One-time weight prep: transposes, Q-scale fold, and attention layout constants.

    Do this ONCE (not per forward call) so the hot path is just the pallas_call.
    """
    scale = 1.0 / math.sqrt(HD)
    in_w, in_b = params["in_w"], params["in_b"]            # (3D, D), (1, 3D)

    # nn.MultiheadAttention scales q AFTER the in-projection -> fold into weight AND bias.
    wq = in_w[:D, :].T * scale                             # (D, D)
    bq = in_b[:, :D] * scale                               # (1, D)
    wk = in_w[D:2 * D, :].T
    bk = in_b[:, D:2 * D]
    wv = in_w[2 * D:, :].T
    bv = in_b[:, 2 * D:]
    wo = params["out_w"].T                                 # (D, D)
    w1 = params["ff1_w"].T                                 # (D, DFF)
    w2 = params["ff2_w"].T                                 # (DFF, D)

    # Attention layout constants (computed on host-side XLA once, passed as operands).
    qi = jnp.arange(BS, dtype=jnp.int32)[:, None]
    kj = jnp.arange(HBS, dtype=jnp.int32)[None, :]
    same_batch = (qi // S) == ((kj % BS) // S)
    attn_bias = jnp.where(same_batch, 0.0, -1e30).astype(jnp.float32)     # (BS, HBS)

    d_head = jnp.arange(D, dtype=jnp.int32)[:, None] // HD
    col_head = jnp.arange(HBS, dtype=jnp.int32)[None, :] // BS
    hmask_t = (d_head == col_head).astype(jnp.float32)                    # (D, HBS)
    hmask = hmask_t.T                                                     # (HBS, D)

    blk_r = jnp.arange(HBS, dtype=jnp.int32)[:, None] // BS
    blk_c = jnp.arange(HBS, dtype=jnp.int32)[None, :] // BS
    sum_mat = (blk_r == blk_c).astype(jnp.float32)                        # (HBS, HBS)

    prepped = (wq, bq, wk, bk, wv, bv, wo, params["out_b"],
               params["ln1_w"], params["ln1_b"],
               w1, params["ff1_b"], w2, params["ff2_b"],
               params["ln2_w"], params["ln2_b"],
               attn_bias, hmask_t, hmask, sum_mat)
    return jax.block_until_ready(prepped)


def _cost_estimate(prepped):
    flops = (3 * 2 * BS * D * D          # Q/K/V projections
             + 2 * BS * D * HBS          # scores
             + 2 * BS * HBS * HBS        # per-head softmax denominators
             + 2 * BS * HBS * D          # PV
             + 2 * BS * D * D            # out projection
             + 2 * BS * D * DFF          # FFN up
             + 2 * BS * DFF * D)         # FFN down
    transcendentals = 2 * BS * HBS + 2 * BS        # exp + approx reciprocal + 2x rsqrt
    bytes_accessed = (BS * D * 4                   # x
                      + sum(int(a.size) * a.dtype.itemsize for a in prepped)
                      + BS * D * 4)                # output
    return pl.CostEstimate(flops=flops, transcendentals=transcendentals,
                           bytes_accessed=bytes_accessed)


def transformer_block(x, prepped):
    """x: (B, S, D) float32. prepped: output of prepare_params()."""
    out_flat = pl.pallas_call(
        transformer_block_kernel,
        out_shape=jax.ShapeDtypeStruct((BS, D), x.dtype),
        cost_estimate=_cost_estimate(prepped),
        # no grid / BlockSpecs: single invocation, every operand lives whole in VMEM
        # (tiny shapes; also avoids double-buffered copies of grid-invariant weights).
    )(x.reshape(BS, D), *prepped)
    return out_flat.reshape(B, S, D)


def reference_block(x, p):
    """Pure-JAX reference of the module's forward pass (eval mode)."""
    def body(xb):
        qkv = xb @ p["in_w"].T + p["in_b"][0]
        q, k, v = qkv[:, :D], qkv[:, D:2 * D], qkv[:, 2 * D:]
        outs = []
        for h in range(H):
            qh = q[:, h * HD:(h + 1) * HD] / math.sqrt(HD)
            kh = k[:, h * HD:(h + 1) * HD]
            vh = v[:, h * HD:(h + 1) * HD]
            a = jax.nn.softmax(qh @ kh.T, axis=-1)
            outs.append(a @ vh)
        attn = jnp.concatenate(outs, -1) @ p["out_w"].T + p["out_b"][0]
        h1 = xb + attn
        h1n = (h1 - h1.mean(-1, keepdims=True)) / jnp.sqrt(
            h1.var(-1, keepdims=True) + EPS) * p["ln1_w"][0] + p["ln1_b"][0]
        f = jnp.maximum(h1n @ p["ff1_w"].T + p["ff1_b"][0], 0.0)
        f = f @ p["ff2_w"].T + p["ff2_b"][0]
        h2 = h1n + f
        return (h2 - h2.mean(-1, keepdims=True)) / jnp.sqrt(
            h2.var(-1, keepdims=True) + EPS) * p["ln2_w"][0] + p["ln2_b"][0]
    return jax.vmap(body)(x)


def init_params(key):
    ks = jax.random.split(key, 8)
    u = lambda k, shape, scale: jax.random.uniform(
        k, shape, jnp.float32, -scale, scale)
    return {
        "in_w":  u(ks[0], (3 * D, D), 1.0 / math.sqrt(D)),
        "in_b":  jnp.zeros((1, 3 * D), jnp.float32),
        "out_w": u(ks[1], (D, D), 1.0 / math.sqrt(D)),
        "out_b": jnp.zeros((1, D), jnp.float32),
        "ln1_w": jnp.ones((1, D), jnp.float32),
        "ln1_b": jnp.zeros((1, D), jnp.float32),
        "ff1_w": u(ks[2], (DFF, D), 1.0 / math.sqrt(D)),
        "ff1_b": u(ks[3], (1, DFF), 1.0 / math.sqrt(D)),
        "ff2_w": u(ks[4], (D, DFF), 1.0 / math.sqrt(DFF)),
        "ff2_b": u(ks[5], (1, D), 1.0 / math.sqrt(DFF)),
        "ln2_w": jnp.ones((1, D), jnp.float32),
        "ln2_b": jnp.zeros((1, D), jnp.float32),
    }


if __name__ == "__main__":
    key = jax.random.PRNGKey(0)
    kx, kp = jax.random.split(key)
    x = jax.random.normal(kx, (B, S, D), jnp.float32)
    params = init_params(kp)

    prepped = prepare_params(params)        # hoisted one-time weight/constant prep
    out = transformer_block(x, prepped)
    out = jax.block_until_ready(out)

    ref = reference_block(x, params)
    assert out.shape == (B, S, D)
    # tolerance covers MXU f32 multi-pass matmul precision and the EUP approx reciprocal
    assert jnp.allclose(out, ref, atol=1e-2, rtol=1e-2), "mismatch vs reference"
    print("KERNEL_OK")
</pallas_src>

<mosaic_0001>
module attributes {stable_mosaic.version = 11 : i64} {
  func.func @transformer_block_kernel(%arg0: memref<16x32xf32, #tpu.memory_space<vmem>>, %arg1: memref<32x32xf32, #tpu.memory_space<vmem>>, %arg2: memref<1x32xf32, #tpu.memory_space<vmem>>, %arg3: memref<32x32xf32, #tpu.memory_space<vmem>>, %arg4: memref<1x32xf32, #tpu.memory_space<vmem>>, %arg5: memref<32x32xf32, #tpu.memory_space<vmem>>, %arg6: memref<1x32xf32, #tpu.memory_space<vmem>>, %arg7: memref<32x32xf32, #tpu.memory_space<vmem>>, %arg8: memref<1x32xf32, #tpu.memory_space<vmem>>, %arg9: memref<1x32xf32, #tpu.memory_space<vmem>>, %arg10: memref<1x32xf32, #tpu.memory_space<vmem>>, %arg11: memref<32x64xf32, #tpu.memory_space<vmem>>, %arg12: memref<1x64xf32, #tpu.memory_space<vmem>>, %arg13: memref<64x32xf32, #tpu.memory_space<vmem>>, %arg14: memref<1x32xf32, #tpu.memory_space<vmem>>, %arg15: memref<1x32xf32, #tpu.memory_space<vmem>>, %arg16: memref<1x32xf32, #tpu.memory_space<vmem>>, %arg17: memref<16x64xf32, #tpu.memory_space<vmem>>, %arg18: memref<32x64xf32, #tpu.memory_space<vmem>>, %arg19: memref<64x32xf32, #tpu.memory_space<vmem>>, %arg20: memref<64x64xf32, #tpu.memory_space<vmem>>, %arg21: memref<16x32xf32, #tpu.memory_space<vmem>>) attributes {dimension_semantics = [], scalar_prefetch = 0 : i64, scratch_operands = 0 : i64, tpu.core_type = #tpu.core_type<tc>} {
    %c0 = arith.constant 0 : index
    %c0_0 = arith.constant 0 : index
    %0 = vector.load %arg0[%c0, %c0_0] : memref<16x32xf32, #tpu.memory_space<vmem>>, vector<16x32xf32>
    %c0_1 = arith.constant 0 : index
    %c0_2 = arith.constant 0 : index
    %1 = vector.load %arg1[%c0_1, %c0_2] : memref<32x32xf32, #tpu.memory_space<vmem>>, vector<32x32xf32>
    %cst = arith.constant dense<0.000000e+00> : vector<16x32xf32>
    %2 = tpu.matmul %0, %1, %cst {dimension_numbers = #tpu.dot_dimension_numbers<[1], [0], [0], [1], [0, 0, 1, 1], [], []>} : vector<16x32xf32>, vector<32x32xf32>, vector<16x32xf32> -> vector<16x32xf32>
    %c0_3 = arith.constant 0 : index
    %c0_4 = arith.constant 0 : index
    %3 = vector.load %arg2[%c0_3, %c0_4] : memref<1x32xf32, #tpu.memory_space<vmem>>, vector<1x32xf32>
    %4 = vector.broadcast %3 : vector<1x32xf32> to vector<16x32xf32>
    %5 = arith.addf %2, %4 : vector<16x32xf32>
    %c0_5 = arith.constant 0 : index
    %c0_6 = arith.constant 0 : index
    %6 = vector.load %arg3[%c0_5, %c0_6] : memref<32x32xf32, #tpu.memory_space<vmem>>, vector<32x32xf32>
    %cst_7 = arith.constant dense<0.000000e+00> : vector<16x32xf32>
    %7 = tpu.matmul %0, %6, %cst_7 {dimension_numbers = #tpu.dot_dimension_numbers<[1], [0], [0], [1], [0, 0, 1, 1], [], []>} : vector<16x32xf32>, vector<32x32xf32>, vector<16x32xf32> -> vector<16x32xf32>
    %c0_8 = arith.constant 0 : index
    %c0_9 = arith.constant 0 : index
    %8 = vector.load %arg4[%c0_8, %c0_9] : memref<1x32xf32, #tpu.memory_space<vmem>>, vector<1x32xf32>
    %9 = vector.broadcast %8 : vector<1x32xf32> to vector<16x32xf32>
    %10 = arith.addf %7, %9 : vector<16x32xf32>
    %c0_10 = arith.constant 0 : index
    %c0_11 = arith.constant 0 : index
    %11 = vector.load %arg5[%c0_10, %c0_11] : memref<32x32xf32, #tpu.memory_space<vmem>>, vector<32x32xf32>
    %cst_12 = arith.constant dense<0.000000e+00> : vector<16x32xf32>
    %12 = tpu.matmul %0, %11, %cst_12 {dimension_numbers = #tpu.dot_dimension_numbers<[1], [0], [0], [1], [0, 0, 1, 1], [], []>} : vector<16x32xf32>, vector<32x32xf32>, vector<16x32xf32> -> vector<16x32xf32>
    %c0_13 = arith.constant 0 : index
    %c0_14 = arith.constant 0 : index
    %13 = vector.load %arg6[%c0_13, %c0_14] : memref<1x32xf32, #tpu.memory_space<vmem>>, vector<1x32xf32>
    %14 = vector.broadcast %13 : vector<1x32xf32> to vector<16x32xf32>
    %15 = arith.addf %12, %14 : vector<16x32xf32>
    %16 = tpu.transpose %10, [1, 0] : vector<16x32xf32> -> vector<32x16xf32>
    %17 = tpu.concatenate %16, %16, %16, %16 in 1 : vector<32x16xf32>, vector<32x16xf32>, vector<32x16xf32>, vector<32x16xf32> -> vector<32x64xf32>
    %c0_15 = arith.constant 0 : index
    %c0_16 = arith.constant 0 : index
    %18 = vector.load %arg18[%c0_15, %c0_16] : memref<32x64xf32, #tpu.memory_space<vmem>>, vector<32x64xf32>
    %19 = arith.mulf %17, %18 : vector<32x64xf32>
    %20 = tpu.concatenate %15, %15, %15, %15 in 0 : vector<16x32xf32>, vector<16x32xf32>, vector<16x32xf32>, vector<16x32xf32> -> vector<64x32xf32>
    %c0_17 = arith.constant 0 : index
    %c0_18 = arith.constant 0 : index
    %21 = vector.load %arg19[%c0_17, %c0_18] : memref<64x32xf32, #tpu.memory_space<vmem>>, vector<64x32xf32>
    %22 = arith.mulf %20, %21 : vector<64x32xf32>
    %cst_19 = arith.constant dense<0.000000e+00> : vector<16x64xf32>
    %23 = tpu.matmul %5, %19, %cst_19 {dimension_numbers = #tpu.dot_dimension_numbers<[1], [0], [0], [1], [0, 0, 1, 1], [], []>} : vector<16x32xf32>, vector<32x64xf32>, vector<16x64xf32> -> vector<16x64xf32>
    %c0_20 = arith.constant 0 : index
    %c0_21 = arith.constant 0 : index
    %24 = vector.load %arg17[%c0_20, %c0_21] : memref<16x64xf32, #tpu.memory_space<vmem>>, vector<16x64xf32>
    %25 = arith.addf %23, %24 : vector<16x64xf32>
    %cst_22 = arith.constant dense<0xFF800000> : vector<16xf32>
    %26 = vector.multi_reduction <maximumf>, %25, %cst_22 [1] : vector<16x64xf32> to vector<16xf32>
    %27 = vector.shape_cast %26 : vector<16xf32> to vector<16x1xf32>
    %28 = vector.broadcast %27 : vector<16x1xf32> to vector<16x64xf32>
    %29 = arith.subf %25, %28 : vector<16x64xf32>
    %30 = math.exp %29 : vector<16x64xf32>
    %c0_23 = arith.constant 0 : index
    %c0_24 = arith.constant 0 : index
    %31 = vector.load %arg20[%c0_23, %c0_24] : memref<64x64xf32, #tpu.memory_space<vmem>>, vector<64x64xf32>
    %cst_25 = arith.constant dense<0.000000e+00> : vector<16x64xf32>
    %32 = tpu.matmul %30, %31, %cst_25 {dimension_numbers = #tpu.dot_dimension_numbers<[1], [0], [0], [1], [0, 0, 1, 1], [], []>} : vector<16x64xf32>, vector<64x64xf32>, vector<16x64xf32> -> vector<16x64xf32>
    %33 = tpu.reciprocal %32 {approx = true} : vector<16x64xf32> -> vector<16x64xf32>
    %34 = arith.mulf %30, %33 : vector<16x64xf32>
    %cst_26 = arith.constant dense<0.000000e+00> : vector<16x32xf32>
    %35 = tpu.matmul %34, %22, %cst_26 {dimension_numbers = #tpu.dot_dimension_numbers<[1], [0], [0], [1], [0, 0, 1, 1], [], []>} : vector<16x64xf32>, vector<64x32xf32>, vector<16x32xf32> -> vector<16x32xf32>
    %c0_27 = arith.constant 0 : index
    %c0_28 = arith.constant 0 : index
    %36 = vector.load %arg7[%c0_27, %c0_28] : memref<32x32xf32, #tpu.memory_space<vmem>>, vector<32x32xf32>
    %cst_29 = arith.constant dense<0.000000e+00> : vector<16x32xf32>
    %37 = tpu.matmul %35, %36, %cst_29 {dimension_numbers = #tpu.dot_dimension_numbers<[1], [0], [0], [1], [0, 0, 1, 1], [], []>} : vector<16x32xf32>, vector<32x32xf32>, vector<16x32xf32> -> vector<16x32xf32>
    %c0_30 = arith.constant 0 : index
    %c0_31 = arith.constant 0 : index
    %38 = vector.load %arg8[%c0_30, %c0_31] : memref<1x32xf32, #tpu.memory_space<vmem>>, vector<1x32xf32>
    %39 = vector.broadcast %38 : vector<1x32xf32> to vector<16x32xf32>
    %40 = arith.addf %37, %39 : vector<16x32xf32>
    %41 = arith.addf %0, %40 : vector<16x32xf32>
    %cst_32 = arith.constant dense<0.000000e+00> : vector<16xf32>
    %42 = vector.multi_reduction <add>, %41, %cst_32 [1] : vector<16x32xf32> to vector<16xf32>
    %43 = vector.shape_cast %42 : vector<16xf32> to vector<16x1xf32>
    %cst_33 = arith.constant 3.200000e+01 : f32
    %44 = vector.broadcast %cst_33 : f32 to vector<16x1xf32>
    %45 = arith.divf %43, %44 : vector<16x1xf32>
    %46 = vector.broadcast %45 : vector<16x1xf32> to vector<16x32xf32>
    %47 = arith.subf %41, %46 : vector<16x32xf32>
    %48 = arith.mulf %47, %47 : vector<16x32xf32>
    %cst_34 = arith.constant dense<0.000000e+00> : vector<16xf32>
    %49 = vector.multi_reduction <add>, %48, %cst_34 [1] : vector<16x32xf32> to vector<16xf32>
    %50 = vector.shape_cast %49 : vector<16xf32> to vector<16x1xf32>
    %cst_35 = arith.constant 3.200000e+01 : f32
    %51 = vector.broadcast %cst_35 : f32 to vector<16x1xf32>
    %52 = arith.divf %50, %51 : vector<16x1xf32>
    %53 = vector.broadcast %45 : vector<16x1xf32> to vector<16x32xf32>
    %54 = arith.subf %41, %53 : vector<16x32xf32>
    %cst_36 = arith.constant 9.99999974E-6 : f32
    %55 = vector.broadcast %cst_36 : f32 to vector<16x1xf32>
    %56 = arith.addf %52, %55 : vector<16x1xf32>
    %57 = math.rsqrt %56 : vector<16x1xf32>
    %58 = vector.broadcast %57 : vector<16x1xf32> to vector<16x32xf32>
    %59 = arith.mulf %54, %58 : vector<16x32xf32>
    %c0_37 = arith.constant 0 : index
    %c0_38 = arith.constant 0 : index
    %60 = vector.load %arg9[%c0_37, %c0_38] : memref<1x32xf32, #tpu.memory_space<vmem>>, vector<1x32xf32>
    %61 = vector.broadcast %60 : vector<1x32xf32> to vector<16x32xf32>
    %62 = arith.mulf %59, %61 : vector<16x32xf32>
    %c0_39 = arith.constant 0 : index
    %c0_40 = arith.constant 0 : index
    %63 = vector.load %arg10[%c0_39, %c0_40] : memref<1x32xf32, #tpu.memory_space<vmem>>, vector<1x32xf32>
    %64 = vector.broadcast %63 : vector<1x32xf32> to vector<16x32xf32>
    %65 = arith.addf %62, %64 : vector<16x32xf32>
    %c0_41 = arith.constant 0 : index
    %c0_42 = arith.constant 0 : index
    %66 = vector.load %arg11[%c0_41, %c0_42] : memref<32x64xf32, #tpu.memory_space<vmem>>, vector<32x64xf32>
    %cst_43 = arith.constant dense<0.000000e+00> : vector<16x64xf32>
    %67 = tpu.matmul %65, %66, %cst_43 {dimension_numbers = #tpu.dot_dimension_numbers<[1], [0], [0], [1], [0, 0, 1, 1], [], []>} : vector<16x32xf32>, vector<32x64xf32>, vector<16x64xf32> -> vector<16x64xf32>
    %c0_44 = arith.constant 0 : index
    %c0_45 = arith.constant 0 : index
    %68 = vector.load %arg12[%c0_44, %c0_45] : memref<1x64xf32, #tpu.memory_space<vmem>>, vector<1x64xf32>
    %69 = vector.broadcast %68 : vector<1x64xf32> to vector<16x64xf32>
    %70 = arith.addf %67, %69 : vector<16x64xf32>
    %cst_46 = arith.constant 0.000000e+00 : f32
    %71 = vector.broadcast %cst_46 : f32 to vector<16x64xf32>
    %72 = arith.maximumf %70, %71 : vector<16x64xf32>
    %c0_47 = arith.constant 0 : index
    %c0_48 = arith.constant 0 : index
    %73 = vector.load %arg13[%c0_47, %c0_48] : memref<64x32xf32, #tpu.memory_space<vmem>>, vector<64x32xf32>
    %cst_49 = arith.constant dense<0.000000e+00> : vector<16x32xf32>
    %74 = tpu.matmul %72, %73, %cst_49 {dimension_numbers = #tpu.dot_dimension_numbers<[1], [0], [0], [1], [0, 0, 1, 1], [], []>} : vector<16x64xf32>, vector<64x32xf32>, vector<16x32xf32> -> vector<16x32xf32>
    %c0_50 = arith.constant 0 : index
    %c0_51 = arith.constant 0 : index
    %75 = vector.load %arg14[%c0_50, %c0_51] : memref<1x32xf32, #tpu.memory_space<vmem>>, vector<1x32xf32>
    %76 = vector.broadcast %75 : vector<1x32xf32> to vector<16x32xf32>
    %77 = arith.addf %74, %76 : vector<16x32xf32>
    %78 = arith.addf %65, %77 : vector<16x32xf32>
    %cst_52 = arith.constant dense<0.000000e+00> : vector<16xf32>
    %79 = vector.multi_reduction <add>, %78, %cst_52 [1] : vector<16x32xf32> to vector<16xf32>
    %80 = vector.shape_cast %79 : vector<16xf32> to vector<16x1xf32>
    %cst_53 = arith.constant 3.200000e+01 : f32
    %81 = vector.broadcast %cst_53 : f32 to vector<16x1xf32>
    %82 = arith.divf %80, %81 : vector<16x1xf32>
    %83 = vector.broadcast %82 : vector<16x1xf32> to vector<16x32xf32>
    %84 = arith.subf %78, %83 : vector<16x32xf32>
    %85 = arith.mulf %84, %84 : vector<16x32xf32>
    %cst_54 = arith.constant dense<0.000000e+00> : vector<16xf32>
    %86 = vector.multi_reduction <add>, %85, %cst_54 [1] : vector<16x32xf32> to vector<16xf32>
    %87 = vector.shape_cast %86 : vector<16xf32> to vector<16x1xf32>
    %cst_55 = arith.constant 3.200000e+01 : f32
    %88 = vector.broadcast %cst_55 : f32 to vector<16x1xf32>
    %89 = arith.divf %87, %88 : vector<16x1xf32>
    %90 = vector.broadcast %82 : vector<16x1xf32> to vector<16x32xf32>
    %91 = arith.subf %78, %90 : vector<16x32xf32>
    %cst_56 = arith.constant 9.99999974E-6 : f32
    %92 = vector.broadcast %cst_56 : f32 to vector<16x1xf32>
    %93 = arith.addf %89, %92 : vector<16x1xf32>
    %94 = math.rsqrt %93 : vector<16x1xf32>
    %95 = vector.broadcast %94 : vector<16x1xf32> to vector<16x32xf32>
    %96 = arith.mulf %91, %95 : vector<16x32xf32>
    %c0_57 = arith.constant 0 : index
    %c0_58 = arith.constant 0 : index
    %97 = vector.load %arg15[%c0_57, %c0_58] : memref<1x32xf32, #tpu.memory_space<vmem>>, vector<1x32xf32>
    %98 = vector.broadcast %97 : vector<1x32xf32> to vector<16x32xf32>
    %99 = arith.mulf %96, %98 : vector<16x32xf32>
    %c0_59 = arith.constant 0 : index
    %c0_60 = arith.constant 0 : index
    %100 = vector.load %arg16[%c0_59, %c0_60] : memref<1x32xf32, #tpu.memory_space<vmem>>, vector<1x32xf32>
    %101 = vector.broadcast %100 : vector<1x32xf32> to vector<16x32xf32>
    %102 = arith.addf %99, %101 : vector<16x32xf32>
    %c0_61 = arith.constant 0 : index
    %c0_62 = arith.constant 0 : index
    %103 = vector.load %arg21[%c0_61, %c0_62] : memref<16x32xf32, #tpu.memory_space<vmem>>, vector<16x32xf32>
    tpu.vector_store %arg21[%c0_61, %c0_62], %102 {strides = array<i32>} : memref<16x32xf32, #tpu.memory_space<vmem>>, vector<16x32xf32>,
    return
  }
}

</mosaic_0001>

<llo_original>
// kernel: tpu_custom_call.1
$region0: #{tpu_custom_call.1}
  #allocation0 [shape = 'u32[]', space=smem, size = 0x4, offset = 0x4, fixed_abs, tag = 'smem constant byte address 0x4 - core index']
  #allocation1 [shape = 'u32[144,128]{1,0:T(1,128)}', space=vmem, size = 0x12000, scoped, tag = 'internal scratch']
  %s0 = inlined_call_operand.hbm [shape: f32[16,32], index: 0, kind: input, shape index: {}]
  %s1 = inlined_call_operand.vmem [shape: f32[32,32], index: 1, kind: input, shape index: {}]
  %s2 = inlined_call_operand.hbm [shape: f32[1,32], index: 2, kind: input, shape index: {}]
  %s3 = inlined_call_operand.vmem [shape: f32[32,32], index: 3, kind: input, shape index: {}]
  %s4 = inlined_call_operand.hbm [shape: f32[1,32], index: 4, kind: input, shape index: {}]
  %s5 = inlined_call_operand.vmem [shape: f32[32,32], index: 5, kind: input, shape index: {}]
  %s6 = inlined_call_operand.hbm [shape: f32[1,32], index: 6, kind: input, shape index: {}]
  %s7 = inlined_call_operand.hbm [shape: f32[32,32], index: 7, kind: input, shape index: {}]
  %s8 = inlined_call_operand.hbm [shape: f32[1,32], index: 8, kind: input, shape index: {}]
  %s9 = inlined_call_operand.hbm [shape: f32[1,32], index: 9, kind: input, shape index: {}]
  %s10 = inlined_call_operand.hbm [shape: f32[1,32], index: 10, kind: input, shape index: {}]
  %s11 = inlined_call_operand.hbm [shape: f32[32,64], index: 11, kind: input, shape index: {}]
  %s12 = inlined_call_operand.hbm [shape: f32[1,64], index: 12, kind: input, shape index: {}]
  %s13 = inlined_call_operand.vmem [shape: f32[64,32], index: 13, kind: input, shape index: {}]
  %s14 = inlined_call_operand.hbm [shape: f32[1,32], index: 14, kind: input, shape index: {}]
  %s15 = inlined_call_operand.hbm [shape: f32[1,32], index: 15, kind: input, shape index: {}]
  %s16 = inlined_call_operand.hbm [shape: f32[1,32], index: 16, kind: input, shape index: {}]
  %s17 = inlined_call_operand.hbm [shape: f32[16,64], index: 17, kind: input, shape index: {}]
  %s18 = inlined_call_operand.vmem [shape: f32[32,64], index: 18, kind: input, shape index: {}]
  %s19 = inlined_call_operand.vmem [shape: f32[64,32], index: 19, kind: input, shape index: {}]
  %s20 = inlined_call_operand.vmem [shape: f32[64,64], index: 20, kind: input, shape index: {}]
  %s21 = inlined_call_operand.hbm [shape: f32[16,32], index: 21, kind: output, shape index: {}]
  %s22 = sld [smem:[#allocation0]]
  $region150: #{tpu_custom_call.1} parent=0
    _
  %s24 = ssub.s32 1, %s22
  %s25 = scalar_select 0, %s24, %s22
  $region1: #{tpu_custom_call.1} parent=0
    #allocation2 [shape = 'u8[8192]{0}', space=vmem, size = 0x2000, scoped, tag = 'input window, operand 0, single buffered']
    #allocation3 [shape = 's32[1]{0}', space=sflag, size = 0x4, scoped, tag = 'scoped memory for tpu_custom_call.1']
    #allocation4 [shape = 's32[1]{0}', space=sflag, size = 0x4, scoped, tag = 'scoped memory for tpu_custom_call.1']
    #allocation5 [shape = 'u8[512]{0}', space=vmem, size = 0x400, scoped, tag = 'input window, operand 2, single buffered']
    #allocation6 [shape = 's32[1]{0}', space=sflag, size = 0x4, scoped, tag = 'scoped memory for tpu_custom_call.1']
    #allocation7 [shape = 'u8[512]{0}', space=vmem, size = 0x400, scoped, tag = 'input window, operand 4, single buffered']
    #allocation8 [shape = 'u8[512]{0}', space=vmem, size = 0x400, scoped, tag = 'input window, operand 6, single buffered']
    #allocation9 [shape = 's32[1]{0}', space=sflag, size = 0x4, scoped, tag = 'scoped memory for tpu_custom_call.1']
    #allocation10 [shape = 'u8[16384]{0}', space=vmem, size = 0x4000, scoped, tag = 'input window, operand 7, single buffered']
    #allocation11 [shape = 'u8[512]{0}', space=vmem, size = 0x400, scoped, tag = 'input window, operand 8, single buffered']
    #allocation12 [shape = 's32[1]{0}', space=sflag, size = 0x4, scoped, tag = 'scoped memory for tpu_custom_call.1']
    #allocation13 [shape = 'u8[512]{0}', space=vmem, size = 0x400, scoped, tag = 'input window, operand 9, single buffered']
    #allocation14 [shape = 'u8[512]{0}', space=vmem, size = 0x400, scoped, tag = 'input window, operand 10, single buffered']
    #allocation15 [shape = 's32[1]{0}', space=sflag, size = 0x4, scoped, tag = 'scoped memory for tpu_custom_call.1']
    #allocation16 [shape = 'u8[16384]{0}', space=vmem, size = 0x4000, scoped, tag = 'input window, operand 11, single buffered']
    #allocation17 [shape = 'u8[512]{0}', space=vmem, size = 0x400, scoped, tag = 'input window, operand 12, single buffered']
    #allocation18 [shape = 's32[1]{0}', space=sflag, size = 0x4, scoped, tag = 'scoped memory for tpu_custom_call.1']
    #allocation19 [shape = 'u8[512]{0}', space=vmem, size = 0x400, scoped, tag = 'input window, operand 14, single buffered']
    #allocation20 [shape = 'u8[512]{0}', space=vmem, size = 0x400, scoped, tag = 'input window, operand 15, single buffered']
    #allocation21 [shape = 's32[1]{0}', space=sflag, size = 0x4, scoped, tag = 'scoped memory for tpu_custom_call.1']
    #allocation22 [shape = 'u8[512]{0}', space=vmem, size = 0x400, scoped, tag = 'input window, operand 16, single buffered']
    #allocation23 [shape = 'u8[8192]{0}', space=vmem, size = 0x2000, scoped, tag = 'input window, operand 17, single buffered']
    #allocation24 [shape = 's32[1]{0}', space=sflag, size = 0x4, scoped, tag = 'scoped memory for tpu_custom_call.1']
    #allocation25 [shape = 'u8[8192]{0}', space=vmem, size = 0x2000, scoped, tag = 'output window, operand 0, single buffered']
    %26 = vsyncpa [#allocation3], 0
    %27 = vsyncpa [#allocation6], 0
    %28 = vsyncpa [#allocation9], 0
    %29 = vsyncpa [#allocation12], 0
    %30 = vsyncpa [#allocation15], 0
    %31 = vsyncpa [#allocation18], 0
    %32 = vsyncpa [#allocation21], 0
    %33 = vsyncpa [#allocation24], 0
    %34 = vsyncpa [#allocation4], 0
    // Predicated region
    $region2: #{tpu_custom_call.1} parent=1 // pred_check
      _
    $region3: #{tpu_custom_call.1} parent=1 // pred_check_branch
      %36 = sbr.rel (0) target = $region5
    $region4: #{tpu_custom_call.1} parent=1 // pred_region
      %s38 = ssub.s32 256, 256
      %39 = vsyncadd [#allocation3], %s38
      %s40 = sshll.u32 [#allocation2], 4
      %s41 = int_to_ptr.vmem [resolvable:$true] %s40
      %46 = dma.hbm_to_vmem [thread:$0]  %s0, 256, %s41, [#allocation3], 128, 128, 8
    $region5: #{tpu_custom_call.1} parent=1 // pred_fallthru
      _
    // Predicated region
    $region6: #{tpu_custom_call.1} parent=1 // pred_check
      _
    $region7: #{tpu_custom_call.1} parent=1 // pred_check_branch
      %48 = sbr.rel (0) target = $region9
    $region8: #{tpu_custom_call.1} parent=1 // pred_region
      _
    $region9: #{tpu_custom_call.1} parent=1 // pred_fallthru
      _
    // Predicated region
    $region10: #{tpu_custom_call.1} parent=1 // pred_check
      _
    $region11: #{tpu_custom_call.1} parent=1 // pred_check_branch
      %50 = sbr.rel (0) target = $region13
    $region12: #{tpu_custom_call.1} parent=1 // pred_region
      %s52 = ssub.s32 16, 16
      %53 = vsyncadd [#allocation6], %s52
      %s55 = sshll.u32 [#allocation5], 4
      %s56 = int_to_ptr.vmem [resolvable:$true] %s55
      %58 = dma.hbm_to_vmem [thread:$0]  %s2, 16, %s56, [#allocation6]
    $region13: #{tpu_custom_call.1} parent=1 // pred_fallthru
      _
    // Predicated region
    $region14: #{tpu_custom_call.1} parent=1 // pred_check
      _
    $region15: #{tpu_custom_call.1} parent=1 // pred_check_branch
      %60 = sbr.rel (0) target = $region17
    $region16: #{tpu_custom_call.1} parent=1 // pred_region
      _
    $region17: #{tpu_custom_call.1} parent=1 // pred_fallthru
      _
    // Predicated region
    $region18: #{tpu_custom_call.1} parent=1 // pred_check
      _
    $region19: #{tpu_custom_call.1} parent=1 // pred_check_branch
      %62 = sbr.rel (0) target = $region21
    $region20: #{tpu_custom_call.1} parent=1 // pred_region
      %s64 = ssub.s32 16, 16
      %65 = vsyncadd [#allocation6], %s64
      %s67 = sshll.u32 [#allocation7], 4
      %s68 = int_to_ptr.vmem [resolvable:$true] %s67
      %70 = dma.hbm_to_vmem [thread:$0]  %s4, 16, %s68, [#allocation6]
    $region21: #{tpu_custom_call.1} parent=1 // pred_fallthru
      _
    // Predicated region
    $region22: #{tpu_custom_call.1} parent=1 // pred_check
      _
    $region23: #{tpu_custom_call.1} parent=1 // pred_check_branch
      %72 = sbr.rel (0) target = $region25
    $region24: #{tpu_custom_call.1} parent=1 // pred_region
      _
    $region25: #{tpu_custom_call.1} parent=1 // pred_fallthru
      _
    // Predicated region
    $region26: #{tpu_custom_call.1} parent=1 // pred_check
      _
    $region27: #{tpu_custom_call.1} parent=1 // pred_check_branch
      %74 = sbr.rel (0) target = $region29
    $region28: #{tpu_custom_call.1} parent=1 // pred_region
      %s76 = ssub.s32 16, 16
      %77 = vsyncadd [#allocation9], %s76
      %s79 = sshll.u32 [#allocation8], 4
      %s80 = int_to_ptr.vmem [resolvable:$true] %s79
      %82 = dma.hbm_to_vmem [thread:$0]  %s6, 16, %s80, [#allocation9]
    $region29: #{tpu_custom_call.1} parent=1 // pred_fallthru
      _
    // Predicated region
    $region30: #{tpu_custom_call.1} parent=1 // pred_check
      _
    $region31: #{tpu_custom_call.1} parent=1 // pred_check_branch
      %84 = sbr.rel (0) target = $region33
    $region32: #{tpu_custom_call.1} parent=1 // pred_region
      %s86 = ssub.s32 512, 512
      %87 = vsyncadd [#allocation9], %s86
      %s88 = sshll.u32 [#allocation10], 4
      %s89 = int_to_ptr.vmem [resolvable:$true] %s88
      %94 = dma.hbm_to_vmem [thread:$0]  %s7, 512, %s89, [#allocation9], 128, 128, 8
    $region33: #{tpu_custom_call.1} parent=1 // pred_fallthru
      _
    // Predicated region
    $region34: #{tpu_custom_call.1} parent=1 // pred_check
      _
    $region35: #{tpu_custom_call.1} parent=1 // pred_check_branch
      %96 = sbr.rel (0) target = $region37
    $region36: #{tpu_custom_call.1} parent=1 // pred_region
      %s98 = ssub.s32 16, 16
      %99 = vsyncadd [#allocation12], %s98
      %s101 = sshll.u32 [#allocation11], 4
      %s102 = int_to_ptr.vmem [resolvable:$true] %s101
      %104 = dma.hbm_to_vmem [thread:$0]  %s8, 16, %s102, [#allocation12]
    $region37: #{tpu_custom_call.1} parent=1 // pred_fallthru
      _
    // Predicated region
    $region38: #{tpu_custom_call.1} parent=1 // pred_check
      _
    $region39: #{tpu_custom_call.1} parent=1 // pred_check_branch
      %106 = sbr.rel (0) target = $region41
    $region40: #{tpu_custom_call.1} parent=1 // pred_region
      %s108 = ssub.s32 16, 16
      %109 = vsyncadd [#allocation12], %s108
      %s111 = sshll.u32 [#allocation13], 4
      %s112 = int_to_ptr.vmem [resolvable:$true] %s111
      %114 = dma.hbm_to_vmem [thread:$0]  %s9, 16, %s112, [#allocation12]
    $region41: #{tpu_custom_call.1} parent=1 // pred_fallthru
      _
    // Predicated region
    $region42: #{tpu_custom_call.1} parent=1 // pred_check
      _
    $region43: #{tpu_custom_call.1} parent=1 // pred_check_branch
      %116 = sbr.rel (0) target = $region45
    $region44: #{tpu_custom_call.1} parent=1 // pred_region
      %s118 = ssub.s32 16, 16
      %119 = vsyncadd [#allocation15], %s118
      %s121 = sshll.u32 [#allocation14], 4
      %s122 = int_to_ptr.vmem [resolvable:$true] %s121
      %124 = dma.hbm_to_vmem [thread:$0]  %s10, 16, %s122, [#allocation15]
    $region45: #{tpu_custom_call.1} parent=1 // pred_fallthru
      _
    // Predicated region
    $region46: #{tpu_custom_call.1} parent=1 // pred_check
      _
    $region47: #{tpu_custom_call.1} parent=1 // pred_check_branch
      %126 = sbr.rel (0) target = $region49
    $region48: #{tpu_custom_call.1} parent=1 // pred_region
      %s128 = ssub.s32 512, 512
      %129 = vsyncadd [#allocation15], %s128
      %s130 = sshll.u32 [#allocation16], 4
      %s131 = int_to_ptr.vmem [resolvable:$true] %s130
      %136 = dma.hbm_to_vmem [thread:$0]  %s11, 512, %s131, [#allocation15], 128, 128, 8
    $region49: #{tpu_custom_call.1} parent=1 // pred_fallthru
      _
    // Predicated region
    $region50: #{tpu_custom_call.1} parent=1 // pred_check
      _
    $region51: #{tpu_custom_call.1} parent=1 // pred_check_branch
      %138 = sbr.rel (0) target = $region53
    $region52: #{tpu_custom_call.1} parent=1 // pred_region
      %s140 = ssub.s32 16, 16
      %141 = vsyncadd [#allocation18], %s140
      %s143 = sshll.u32 [#allocation17], 4
      %s144 = int_to_ptr.vmem [resolvable:$true] %s143
      %146 = dma.hbm_to_vmem [thread:$0]  %s12, 16, %s144, [#allocation18]
    $region53: #{tpu_custom_call.1} parent=1 // pred_fallthru
      _
    // Predicated region
    $region54: #{tpu_custom_call.1} parent=1 // pred_check
      _
    $region55: #{tpu_custom_call.1} parent=1 // pred_check_branch
      %148 = sbr.rel (0) target = $region57
    $region56: #{tpu_custom_call.1} parent=1 // pred_region
      _
    $region57: #{tpu_custom_call.1} parent=1 // pred_fallthru
      _
    // Predicated region
    $region58: #{tpu_custom_call.1} parent=1 // pred_check
      _
    $region59: #{tpu_custom_call.1} parent=1 // pred_check_branch
      %150 = sbr.rel (0) target = $region61
    $region60: #{tpu_custom_call.1} parent=1 // pred_region
      %s152 = ssub.s32 16, 16
      %153 = vsyncadd [#allocation18], %s152
      %s155 = sshll.u32 [#allocation19], 4
      %s156 = int_to_ptr.vmem [resolvable:$true] %s155
      %158 = dma.hbm_to_vmem [thread:$0]  %s14, 16, %s156, [#allocation18]
    $region61: #{tpu_custom_call.1} parent=1 // pred_fallthru
      _
    // Predicated region
    $region62: #{tpu_custom_call.1} parent=1 // pred_check
      _
    $region63: #{tpu_custom_call.1} parent=1 // pred_check_branch
      %160 = sbr.rel (0) target = $region65
    $region64: #{tpu_custom_call.1} parent=1 // pred_region
      %s162 = ssub.s32 16, 16
      %163 = vsyncadd [#allocation21], %s162
      %s165 = sshll.u32 [#allocation20], 4
      %s166 = int_to_ptr.vmem [resolvable:$true] %s165
      %168 = dma.hbm_to_vmem [thread:$0]  %s15, 16, %s166, [#allocation21]
    $region65: #{tpu_custom_call.1} parent=1 // pred_fallthru
      _
    // Predicated region
    $region66: #{tpu_custom_call.1} parent=1 // pred_check
      _
    $region67: #{tpu_custom_call.1} parent=1 // pred_check_branch
      %170 = sbr.rel (0) target = $region69
    $region68: #{tpu_custom_call.1} parent=1 // pred_region
      %s172 = ssub.s32 16, 16
      %173 = vsyncadd [#allocation21], %s172
      %s175 = sshll.u32 [#allocation22], 4
      %s176 = int_to_ptr.vmem [resolvable:$true] %s175
      %178 = dma.hbm_to_vmem [thread:$0]  %s16, 16, %s176, [#allocation21]
    $region69: #{tpu_custom_call.1} parent=1 // pred_fallthru
      _
    // Predicated region
    $region70: #{tpu_custom_call.1} parent=1 // pred_check
      _
    $region71: #{tpu_custom_call.1} parent=1 // pred_check_branch
      %180 = sbr.rel (0) target = $region73
    $region72: #{tpu_custom_call.1} parent=1 // pred_region
      %s182 = ssub.s32 256, 256
      %183 = vsyncadd [#allocation24], %s182
      %s184 = sshll.u32 [#allocation23], 4
      %s185 = int_to_ptr.vmem [resolvable:$true] %s184
      %190 = dma.hbm_to_vmem [thread:$0]  %s17, 256, %s185, [#allocation24], 128, 128, 8
    $region73: #{tpu_custom_call.1} parent=1 // pred_fallthru
      _
    // Predicated region
    $region74: #{tpu_custom_call.1} parent=1 // pred_check
      _
    $region75: #{tpu_custom_call.1} parent=1 // pred_check_branch
      %192 = sbr.rel (0) target = $region77
    $region76: #{tpu_custom_call.1} parent=1 // pred_region
      _
    $region77: #{tpu_custom_call.1} parent=1 // pred_fallthru
      _
    // Predicated region
    $region78: #{tpu_custom_call.1} parent=1 // pred_check
      _
    $region79: #{tpu_custom_call.1} parent=1 // pred_check_branch
      %194 = sbr.rel (0) target = $region81
    $region80: #{tpu_custom_call.1} parent=1 // pred_region
      _
    $region81: #{tpu_custom_call.1} parent=1 // pred_fallthru
      _
    // Predicated region
    $region82: #{tpu_custom_call.1} parent=1 // pred_check
      _
    $region83: #{tpu_custom_call.1} parent=1 // pred_check_branch
      %196 = sbr.rel (0) target = $region85
    $region84: #{tpu_custom_call.1} parent=1 // pred_region
      _
    $region85: #{tpu_custom_call.1} parent=1 // pred_fallthru
      _
    // Predicated region
    $region86: #{tpu_custom_call.1} parent=1 // pred_check
      _
    $region87: #{tpu_custom_call.1} parent=1 // pred_check_branch
      %198 = sbr.rel (0) target = $region89
    $region88: #{tpu_custom_call.1} parent=1 // pred_region
      %199 = dma.done [#allocation3], 256
    $region89: #{tpu_custom_call.1} parent=1 // pred_fallthru
      _
    // Predicated region
    $region90: #{tpu_custom_call.1} parent=1 // pred_check
      _
    $region91: #{tpu_custom_call.1} parent=1 // pred_check_branch
      %201 = sbr.rel (0) target = $region93
    $region92: #{tpu_custom_call.1} parent=1 // pred_region
      %202 = dma.done [#allocation6], 16
    $region93: #{tpu_custom_call.1} parent=1 // pred_fallthru
      _
    // Predicated region
    $region94: #{tpu_custom_call.1} parent=1 // pred_check
      _
    $region95: #{tpu_custom_call.1} parent=1 // pred_check_branch
      %204 = sbr.rel (0) target = $region97
    $region96: #{tpu_custom_call.1} parent=1 // pred_region
      %205 = dma.done [#allocation6], 16
    $region97: #{tpu_custom_call.1} parent=1 // pred_fallthru
      _
    // Predicated region
    $region98: #{tpu_custom_call.1} parent=1 // pred_check
      _
    $region99: #{tpu_custom_call.1} parent=1 // pred_check_branch
      %207 = sbr.rel (0) target = $region101
    $region100: #{tpu_custom_call.1} parent=1 // pred_region
      %208 = dma.done [#allocation9], 16
    $region101: #{tpu_custom_call.1} parent=1 // pred_fallthru
      _
    // Predicated region
    $region102: #{tpu_custom_call.1} parent=1 // pred_check
      _
    $region103: #{tpu_custom_call.1} parent=1 // pred_check_branch
      %210 = sbr.rel (0) target = $region105
    $region104: #{tpu_custom_call.1} parent=1 // pred_region
      %211 = dma.done [#allocation9], 512
    $region105: #{tpu_custom_call.1} parent=1 // pred_fallthru
      _
    // Predicated region
    $region106: #{tpu_custom_call.1} parent=1 // pred_check
      _
    $region107: #{tpu_custom_call.1} parent=1 // pred_check_branch
      %213 = sbr.rel (0) target = $region109
    $region108: #{tpu_custom_call.1} parent=1 // pred_region
      %214 = dma.done [#allocation12], 16
    $region109: #{tpu_custom_call.1} parent=1 // pred_fallthru
      _
    // Predicated region
    $region110: #{tpu_custom_call.1} parent=1 // pred_check
      _
    $region111: #{tpu_custom_call.1} parent=1 // pred_check_branch
      %216 = sbr.rel (0) target = $region113
    $region112: #{tpu_custom_call.1} parent=1 // pred_region
      %217 = dma.done [#allocation12], 16
    $region113: #{tpu_custom_call.1} parent=1 // pred_fallthru
      _
    // Predicated region
    $region114: #{tpu_custom_call.1} parent=1 // pred_check
      _
    $region115: #{tpu_custom_call.1} parent=1 // pred_check_branch
      %219 = sbr.rel (0) target = $region117
    $region116: #{tpu_custom_call.1} parent=1 // pred_region
      %220 = dma.done [#allocation15], 16
    $region117: #{tpu_custom_call.1} parent=1 // pred_fallthru
      _
    // Predicated region
    $region118: #{tpu_custom_call.1} parent=1 // pred_check
      _
    $region119: #{tpu_custom_call.1} parent=1 // pred_check_branch
      %222 = sbr.rel (0) target = $region121
    $region120: #{tpu_custom_call.1} parent=1 // pred_region
      %223 = dma.done [#allocation15], 512
    $region121: #{tpu_custom_call.1} parent=1 // pred_fallthru
      _
    // Predicated region
    $region122: #{tpu_custom_call.1} parent=1 // pred_check
      _
    $region123: #{tpu_custom_call.1} parent=1 // pred_check_branch
      %225 = sbr.rel (0) target = $region125
    $region124: #{tpu_custom_call.1} parent=1 // pred_region
      %226 = dma.done [#allocation18], 16
    $region125: #{tpu_custom_call.1} parent=1 // pred_fallthru
      _
    // Predicated region
    $region126: #{tpu_custom_call.1} parent=1 // pred_check
      _
    $region127: #{tpu_custom_call.1} parent=1 // pred_check_branch
      %228 = sbr.rel (0) target = $region129
    $region128: #{tpu_custom_call.1} parent=1 // pred_region
      %229 = dma.done [#allocation18], 16
    $region129: #{tpu_custom_call.1} parent=1 // pred_fallthru
      _
    // Predicated region
    $region130: #{tpu_custom_call.1} parent=1 // pred_check
      _
    $region131: #{tpu_custom_call.1} parent=1 // pred_check_branch
      %231 = sbr.rel (0) target = $region133
    $region132: #{tpu_custom_call.1} parent=1 // pred_region
      %232 = dma.done [#allocation21], 16
    $region133: #{tpu_custom_call.1} parent=1 // pred_fallthru
      _
    // Predicated region
    $region134: #{tpu_custom_call.1} parent=1 // pred_check
      _
    $region135: #{tpu_custom_call.1} parent=1 // pred_check_branch
      %234 = sbr.rel (0) target = $region137
    $region136: #{tpu_custom_call.1} parent=1 // pred_region
      %235 = dma.done [#allocation21], 16
    $region137: #{tpu_custom_call.1} parent=1 // pred_fallthru
      _
    // Predicated region
    $region138: #{tpu_custom_call.1} parent=1 // pred_check
      _
    $region139: #{tpu_custom_call.1} parent=1 // pred_check_branch
      %237 = sbr.rel (0) target = $region141
    $region140: #{tpu_custom_call.1} parent=1 // pred_region
      %238 = dma.done [#allocation24], 256
    $region141: #{tpu_custom_call.1} parent=1 // pred_fallthru
      _
    %v239 = vld [vmem:[#allocation2] sm:$0xff]
    %v240 = vld [vmem:[#allocation2 + $0x8] sm:$0xff]
    %v241 = vld [vmem:[%s1] sm:$0xff]
    %v242 = vld [vmem:[%s1 + $0x8] sm:$0xff]
    %v243 = vld [vmem:[%s1 + $0x10] sm:$0xff]
    %v244 = vld [vmem:[%s1 + $0x18] sm:$0xff]
    %v245 = vld [vmem:[#allocation5] sm:$0x1]
    %v247 = vlaneseq
    %v248 = vshrl.u32 %v247, 7
    %v249 = vsub.s32 0, %v248
    %v250 = vrot.slane %v245, %v249
    %vm252 = vcmask 261120
    %v254 = vsel %vm252, %v239, 0
    %v257 = vsel %vm252, %v240, 0
    %259 = vmatprep.subr.mxu0 0.0
    %260 = vmatpush1.msra.mxu0 0.0
    %261 = vmatprep.subr.mxu0 0.0
    %262 = vmatpush1.msra.mxu0 0.0
    %263 = vmatprep.subr.mxu0 0.0
    %264 = vmatpush1.msra.mxu0 0.0
    %265 = vmatprep.subr.mxu0 0.0
    %266 = vmatpush1.msra.mxu0 0.0
    %267 = vmatprep.subr.mxu0 0.0
    %268 = vmatpush1.msra.mxu0 0.0
    %269 = vmatprep.subr.mxu0 0.0
    %270 = vmatpush1.msra.mxu0 0.0
    %271 = vmatprep.subr.mxu0 0.0
    %272 = vmatpush1.msra.mxu0 0.0
    %273 = vmatprep.subr.mxu0 0.0
    %274 = vmatpush1.msra.mxu0 0.0
    %275 = vmatprep.subr.mxu0 0.0
    %276 = vmatpush1.msra.mxu0 0.0
    %277 = vmatprep.subr.mxu0 0.0
    %278 = vmatpush1.msra.mxu0 0.0
    %279 = vmatprep.subr.mxu0 0.0
    %280 = vmatpush1.msra.mxu0 0.0
    %281 = vmatprep.subr.mxu0 0.0
    %282 = vmatpush1.msra.mxu0 0.0
    %283 = vmatprep.subr.mxu0 0.0
    %284 = vmatpush1.msra.mxu0 %v244
    %285 = vmatprep.subr.mxu0 0.0
    %286 = vmatpush1.msra.mxu0 %v243
    %287 = vmatprep.subr.mxu0 0.0
    %288 = vmatpush1.msra.mxu0 %v242
    %289 = vmatprep.subr.mxu0 0.0
    %290 = vmatpush1.msra.mxu0 %v241
    %291 = vmatprep.subr.mxu0 0.0
    %292 = vmatpush2.msra.mxu0 0.0
    %293 = vmatprep.subr.mxu0 0.0
    %294 = vmatpush2.msra.mxu0 0.0
    %295 = vmatprep.subr.mxu0 0.0
    %296 = vmatpush2.msra.mxu0 0.0
    %297 = vmatprep.subr.mxu0 0.0
    %298 = vmatpush2.msra.mxu0 0.0
    %299 = vmatprep.subr.mxu0 0.0
    %300 = vmatpush2.msra.mxu0 0.0
    %301 = vmatprep.subr.mxu0 0.0
    %302 = vmatpush2.msra.mxu0 0.0
    %303 = vmatprep.subr.mxu0 0.0
    %304 = vmatpush2.msra.mxu0 0.0
    %305 = vmatprep.subr.mxu0 0.0
    %306 = vmatpush2.msra.mxu0 0.0
    %307 = vmatprep.subr.mxu0 0.0
    %308 = vmatpush2.msra.mxu0 0.0
    %309 = vmatprep.subr.mxu0 0.0
    %310 = vmatpush2.msra.mxu0 0.0
    %311 = vmatprep.subr.mxu0 0.0
    %312 = vmatpush2.msra.mxu0 0.0
    %313 = vmatprep.subr.mxu0 0.0
    %314 = vmatpush2.msra.mxu0 0.0
    %315 = vmatprep.subr.mxu0 0.0
    %316 = vmatpush2.msra.mxu0 0.0
    %317 = vmatprep.subr.mxu0 0.0
    %318 = vmatpush2.msra.mxu0 0.0
    %319 = vmatprep.subr.mxu0 0.0
    %320 = vmatpush2.msra.mxu0 0.0
    %321 = vmatprep.subr.mxu0 0.0
    %322 = vmatpush2.msra.mxu0 0.0
    %323 = vmatprep.mubr.f32.mxu0 0.0
    %324 = vmatmul.mubr.f32.gmra.mxu0 %v254
    %v325 = vpop.f32.mrf.mxu0
    %v326 = vadd.f32 %v250, %v325
    %v327 = vpop.f32.mrf.mxu0
    %328 = vmatprep.mubr.f32.mxu0 0.0
    %329 = vmatmul.mubr.f32.gmra.mxu0 %v257
    %v330 = vpop.f32.mrf.mxu0
    %v331 = vadd.f32 %v250, %v330
    %v332 = vpop.f32.mrf.mxu0
    %333 = vdwg.mxu0
    %v334 = vld [vmem:[%s3] sm:$0xff]
    %v335 = vld [vmem:[%s3 + $0x8] sm:$0xff]
    %v336 = vld [vmem:[%s3 + $0x10] sm:$0xff]
    %v337 = vld [vmem:[%s3 + $0x18] sm:$0xff]
    %v338 = vld [vmem:[#allocation7] sm:$0x1]
    %v340 = vlaneseq
    %v341 = vshrl.u32 %v340, 7
    %v342 = vsub.s32 0, %v341
    %v343 = vrot.slane %v338, %v342
    %345 = vmatprep.subr.mxu0 0.0
    %346 = vmatpush1.msra.mxu0 0.0
    %347 = vmatprep.subr.mxu0 0.0
    %348 = vmatpush1.msra.mxu0 0.0
    %349 = vmatprep.subr.mxu0 0.0
    %350 = vmatpush1.msra.mxu0 0.0
    %351 = vmatprep.subr.mxu0 0.0
    %352 = vmatpush1.msra.mxu0 0.0
    %353 = vmatprep.subr.mxu0 0.0
    %354 = vmatpush1.msra.mxu0 0.0
    %355 = vmatprep.subr.mxu0 0.0
    %356 = vmatpush1.msra.mxu0 0.0
    %357 = vmatprep.subr.mxu0 0.0
    %358 = vmatpush1.msra.mxu0 0.0
    %359 = vmatprep.subr.mxu0 0.0
    %360 = vmatpush1.msra.mxu0 0.0
    %361 = vmatprep.subr.mxu0 0.0
    %362 = vmatpush1.msra.mxu0 0.0
    %363 = vmatprep.subr.mxu0 0.0
    %364 = vmatpush1.msra.mxu0 0.0
    %365 = vmatprep.subr.mxu0 0.0
    %366 = vmatpush1.msra.mxu0 0.0
    %367 = vmatprep.subr.mxu0 0.0
    %368 = vmatpush1.msra.mxu0 0.0
    %369 = vmatprep.subr.mxu0 0.0
    %370 = vmatpush1.msra.mxu0 %v337
    %371 = vmatprep.subr.mxu0 0.0
    %372 = vmatpush1.msra.mxu0 %v336
    %373 = vmatprep.subr.mxu0 0.0
    %374 = vmatpush1.msra.mxu0 %v335
    %375 = vmatprep.subr.mxu0 0.0
    %376 = vmatpush1.msra.mxu0 %v334
    %377 = vmatprep.subr.mxu0 0.0
    %378 = vmatpush2.msra.mxu0 0.0
    %379 = vmatprep.subr.mxu0 0.0
    %380 = vmatpush2.msra.mxu0 0.0
    %381 = vmatprep.subr.mxu0 0.0
    %382 = vmatpush2.msra.mxu0 0.0
    %383 = vmatprep.subr.mxu0 0.0
    %384 = vmatpush2.msra.mxu0 0.0
    %385 = vmatprep.subr.mxu0 0.0
    %386 = vmatpush2.msra.mxu0 0.0
    %387 = vmatprep.subr.mxu0 0.0
    %388 = vmatpush2.msra.mxu0 0.0
    %389 = vmatprep.subr.mxu0 0.0
    %390 = vmatpush2.msra.mxu0 0.0
    %391 = vmatprep.subr.mxu0 0.0
    %392 = vmatpush2.msra.mxu0 0.0
    %393 = vmatprep.subr.mxu0 0.0
    %394 = vmatpush2.msra.mxu0 0.0
    %395 = vmatprep.subr.mxu0 0.0
    %396 = vmatpush2.msra.mxu0 0.0
    %397 = vmatprep.subr.mxu0 0.0
    %398 = vmatpush2.msra.mxu0 0.0
    %399 = vmatprep.subr.mxu0 0.0
    %400 = vmatpush2.msra.mxu0 0.0
    %401 = vmatprep.subr.mxu0 0.0
    %402 = vmatpush2.msra.mxu0 0.0
    %403 = vmatprep.subr.mxu0 0.0
    %404 = vmatpush2.msra.mxu0 0.0
    %405 = vmatprep.subr.mxu0 0.0
    %406 = vmatpush2.msra.mxu0 0.0
    %407 = vmatprep.subr.mxu0 0.0
    %408 = vmatpush2.msra.mxu0 0.0
    %409 = vmatprep.mubr.f32.mxu0 0.0
    %410 = vmatmul.mubr.f32.gmra.mxu0 %v254
    %v411 = vpop.f32.mrf.mxu0
    %v412 = vadd.f32 %v343, %v411
    %v413 = vpop.f32.mrf.mxu0
    %414 = vmatprep.mubr.f32.mxu0 0.0
    %415 = vmatmul.mubr.f32.gmra.mxu0 %v257
    %v416 = vpop.f32.mrf.mxu0
    %v417 = vadd.f32 %v343, %v416
    %v418 = vpop.f32.mrf.mxu0
    %419 = vdwg.mxu0
    %v420 = vld [vmem:[%s5] sm:$0xff]
    %v421 = vld [vmem:[%s5 + $0x8] sm:$0xff]
    %v422 = vld [vmem:[%s5 + $0x10] sm:$0xff]
    %v423 = vld [vmem:[%s5 + $0x18] sm:$0xff]
    %v424 = vld [vmem:[#allocation8] sm:$0x1]
    %v426 = vlaneseq
    %v427 = vshrl.u32 %v426, 7
    %v428 = vsub.s32 0, %v427
    %v429 = vrot.slane %v424, %v428
    %431 = vmatprep.subr.mxu0 0.0
    %432 = vmatpush1.msra.mxu0 0.0
    %433 = vmatprep.subr.mxu0 0.0
    %434 = vmatpush1.msra.mxu0 0.0
    %435 = vmatprep.subr.mxu0 0.0
    %436 = vmatpush1.msra.mxu0 0.0
    %437 = vmatprep.subr.mxu0 0.0
    %438 = vmatpush1.msra.mxu0 0.0
    %439 = vmatprep.subr.mxu0 0.0
    %440 = vmatpush1.msra.mxu0 0.0
    %441 = vmatprep.subr.mxu0 0.0
    %442 = vmatpush1.msra.mxu0 0.0
    %443 = vmatprep.subr.mxu0 0.0
    %444 = vmatpush1.msra.mxu0 0.0
    %445 = vmatprep.subr.mxu0 0.0
    %446 = vmatpush1.msra.mxu0 0.0
    %447 = vmatprep.subr.mxu0 0.0
    %448 = vmatpush1.msra.mxu0 0.0
    %449 = vmatprep.subr.mxu0 0.0
    %450 = vmatpush1.msra.mxu0 0.0
    %451 = vmatprep.subr.mxu0 0.0
    %452 = vmatpush1.msra.mxu0 0.0
    %453 = vmatprep.subr.mxu0 0.0
    %454 = vmatpush1.msra.mxu0 0.0
    %455 = vmatprep.subr.mxu0 0.0
    %456 = vmatpush1.msra.mxu0 %v423
    %457 = vmatprep.subr.mxu0 0.0
    %458 = vmatpush1.msra.mxu0 %v422
    %459 = vmatprep.subr.mxu0 0.0
    %460 = vmatpush1.msra.mxu0 %v421
    %461 = vmatprep.subr.mxu0 0.0
    %462 = vmatpush1.msra.mxu0 %v420
    %463 = vmatprep.subr.mxu0 0.0
    %464 = vmatpush2.msra.mxu0 0.0
    %465 = vmatprep.subr.mxu0 0.0
    %466 = vmatpush2.msra.mxu0 0.0
    %467 = vmatprep.subr.mxu0 0.0
    %468 = vmatpush2.msra.mxu0 0.0
    %469 = vmatprep.subr.mxu0 0.0
    %470 = vmatpush2.msra.mxu0 0.0
    %471 = vmatprep.subr.mxu0 0.0
    %472 = vmatpush2.msra.mxu0 0.0
    %473 = vmatprep.subr.mxu0 0.0
    %474 = vmatpush2.msra.mxu0 0.0
    %475 = vmatprep.subr.mxu0 0.0
    %476 = vmatpush2.msra.mxu0 0.0
    %477 = vmatprep.subr.mxu0 0.0
    %478 = vmatpush2.msra.mxu0 0.0
    %479 = vmatprep.subr.mxu0 0.0
    %480 = vmatpush2.msra.mxu0 0.0
    %481 = vmatprep.subr.mxu0 0.0
    %482 = vmatpush2.msra.mxu0 0.0
    %483 = vmatprep.subr.mxu0 0.0
    %484 = vmatpush2.msra.mxu0 0.0
    %485 = vmatprep.subr.mxu0 0.0
    %486 = vmatpush2.msra.mxu0 0.0
    %487 = vmatprep.subr.mxu0 0.0
    %488 = vmatpush2.msra.mxu0 0.0
    %489 = vmatprep.subr.mxu0 0.0
    %490 = vmatpush2.msra.mxu0 0.0
    %491 = vmatprep.subr.mxu0 0.0
    %492 = vmatpush2.msra.mxu0 0.0
    %493 = vmatprep.subr.mxu0 0.0
    %494 = vmatpush2.msra.mxu0 0.0
    %495 = vmatprep.mubr.f32.mxu0 0.0
    %496 = vmatmul.mubr.f32.gmra.mxu0 %v254
    %v497 = vpop.f32.mrf.mxu0
    %v498 = vadd.f32 %v429, %v497
    %v499 = vpop.f32.mrf.mxu0
    %500 = vmatprep.mubr.f32.mxu0 0.0
    %501 = vmatmul.mubr.f32.gmra.mxu0 %v257
    %v502 = vpop.f32.mrf.mxu0
    %v503 = vadd.f32 %v429, %v502
    %v504 = vpop.f32.mrf.mxu0
    %505 = vdwg.mxu0
    %506 = vxpose.xlu0.b32.start [1/16] %v412, 128
    %507 = vxpose.xlu0.b32.cont [2/16] %v417, 128
    %508 = vxpose.xlu0.b32.cont [3/16] 0.0, 128
    %509 = vxpose.xlu0.b32.cont [4/16] 0.0, 128
    %510 = vxpose.xlu0.b32.cont [5/16] 0.0, 128
    %511 = vxpose.xlu0.b32.cont [6/16] 0.0, 128
    %512 = vxpose.xlu0.b32.cont [7/16] 0.0, 128
    %513 = vxpose.xlu0.b32.cont [8/16] 0.0, 128
    %514 = vxpose.xlu0.b32.cont [9/16] 0.0, 128
    %515 = vxpose.xlu0.b32.cont [10/16] 0.0, 128
    %516 = vxpose.xlu0.b32.cont [11/16] 0.0, 128
    %517 = vxpose.xlu0.b32.cont [12/16] 0.0, 128
    %518 = vxpose.xlu0.b32.cont [13/16] 0.0, 128
    %519 = vxpose.xlu0.b32.cont [14/16] 0.0, 128
    %520 = vxpose.xlu0.b32.cont [15/16] 0.0, 128
    %521 = vxpose.xlu0.b32.end [16/16] 0.0, 128
    %v522 = vpop.trf.xlu0
    %v523 = vpop.trf.xlu0
    %v524 = vpop.trf.xlu0
    %v525 = vpop.trf.xlu0
    %v526 = vpop.trf.xlu0
    %v527 = vpop.trf.xlu0
    %v528 = vpop.trf.xlu0
    %v529 = vpop.trf.xlu0
    %v530 = vpop.trf.xlu0
    %v531 = vpop.trf.xlu0
    %v532 = vpop.trf.xlu0
    %v533 = vpop.trf.xlu0
    %v534 = vpop.trf.xlu0
    %v535 = vpop.trf.xlu0
    %v536 = vpop.trf.xlu0
    %v537 = vpop.trf.xlu0
    %542 = vrot.lane.b32.xlu0 %v522, 16
    %v543 = vpop.permute.xlu0 %542
    %544 = vrot.lane.b32.xlu0 %v523, 16
    %v545 = vpop.permute.xlu0 %544
    %546 = vrot.lane.b32.xlu0 %v524, 16
    %v547 = vpop.permute.xlu0 %546
    %548 = vrot.lane.b32.xlu0 %v525, 16
    %v549 = vpop.permute.xlu0 %548
    %554 = vrot.lane.b32.xlu0 %v522, 32
    %v555 = vpop.permute.xlu0 %554
    %556 = vrot.lane.b32.xlu0 %v523, 32
    %v557 = vpop.permute.xlu0 %556
    %558 = vrot.lane.b32.xlu0 %v524, 32
    %v559 = vpop.permute.xlu0 %558
    %560 = vrot.lane.b32.xlu0 %v525, 32
    %v561 = vpop.permute.xlu0 %560
    %566 = vrot.lane.b32.xlu0 %v522, 48
    %v567 = vpop.permute.xlu0 %566
    %568 = vrot.lane.b32.xlu0 %v523, 48
    %v569 = vpop.permute.xlu0 %568
    %570 = vrot.lane.b32.xlu0 %v524, 48
    %v571 = vpop.permute.xlu0 %570
    %572 = vrot.lane.b32.xlu0 %v525, 48
    %v573 = vpop.permute.xlu0 %572
    %vm578 = vcmask 130048
    %v579 = vsel %vm578, %v522, %v543
    %v580 = vsel %vm578, %v523, %v545
    %v581 = vsel %vm578, %v524, %v547
    %v582 = vsel %vm578, %v525, %v549
    %v583 = vsel %vm252, %v579, %v555
    %v584 = vsel %vm252, %v580, %v557
    %v585 = vsel %vm252, %v581, %v559
    %v586 = vsel %vm252, %v582, %v561
    %vm587 = vcmask 392192
    %v588 = vsel %vm587, %v583, %v567
    %v589 = vsel %vm587, %v584, %v569
    %v590 = vsel %vm587, %v585, %v571
    %v591 = vsel %vm587, %v586, %v573
    %v592 = vld [vmem:[%s18] sm:$0xff]
    %v593 = vld [vmem:[%s18 + $0x8] sm:$0xff]
    %v594 = vld [vmem:[%s18 + $0x10] sm:$0xff]
    %v595 = vld [vmem:[%s18 + $0x18] sm:$0xff]
    %v596 = vmul.f32 %v588, %v592
    %v597 = vmul.f32 %v589, %v593
    %v598 = vmul.f32 %v590, %v594
    %v599 = vmul.f32 %v591, %v595
    %v600 = vld [vmem:[%s19] sm:$0xff]
    %v601 = vld [vmem:[%s19 + $0x8] sm:$0xff]
    %v602 = vld [vmem:[%s19 + $0x10] sm:$0xff]
    %v603 = vld [vmem:[%s19 + $0x18] sm:$0xff]
    %v604 = vld [vmem:[%s19 + $0x20] sm:$0xff]
    %v605 = vld [vmem:[%s19 + $0x28] sm:$0xff]
    %v606 = vld [vmem:[%s19 + $0x30] sm:$0xff]
    %v607 = vld [vmem:[%s19 + $0x38] sm:$0xff]
    %v608 = vmul.f32 %v498, %v600
    %v609 = vmul.f32 %v503, %v601
    %v610 = vmul.f32 %v498, %v602
    %v611 = vmul.f32 %v503, %v603
    %v612 = vmul.f32 %v498, %v604
    %v613 = vmul.f32 %v503, %v605
    %v614 = vmul.f32 %v498, %v606
    %v615 = vmul.f32 %v503, %v607
    %v616 = vld [vmem:[#allocation23] sm:$0xff]
    %v617 = vld [vmem:[#allocation23 + $0x8] sm:$0xff]
    %v619 = vsel %vm252, %v326, 0
    %v622 = vsel %vm252, %v331, 0
    %624 = vmatprep.subr.mxu0 0.0
    %625 = vmatpush1.msra.mxu0 0.0
    %626 = vmatprep.subr.mxu0 0.0
    %627 = vmatpush1.msra.mxu0 0.0
    %628 = vmatprep.subr.mxu0 0.0
    %629 = vmatpush1.msra.mxu0 0.0
    %630 = vmatprep.subr.mxu0 0.0
    %631 = vmatpush1.msra.mxu0 0.0
    %632 = vmatprep.subr.mxu0 0.0
    %633 = vmatpush1.msra.mxu0 0.0
    %634 = vmatprep.subr.mxu0 0.0
    %635 = vmatpush1.msra.mxu0 0.0
    %636 = vmatprep.subr.mxu0 0.0
    %637 = vmatpush1.msra.mxu0 0.0
    %638 = vmatprep.subr.mxu0 0.0
    %639 = vmatpush1.msra.mxu0 0.0
    %640 = vmatprep.subr.mxu0 0.0
    %641 = vmatpush1.msra.mxu0 0.0
    %642 = vmatprep.subr.mxu0 0.0
    %643 = vmatpush1.msra.mxu0 0.0
    %644 = vmatprep.subr.mxu0 0.0
    %645 = vmatpush1.msra.mxu0 0.0
    %646 = vmatprep.subr.mxu0 0.0
    %647 = vmatpush1.msra.mxu0 0.0
    %648 = vmatprep.subr.mxu0 0.0
    %649 = vmatpush1.msra.mxu0 %v599
    %650 = vmatprep.subr.mxu0 0.0
    %651 = vmatpush1.msra.mxu0 %v598
    %652 = vmatprep.subr.mxu0 0.0
    %653 = vmatpush1.msra.mxu0 %v597
    %654 = vmatprep.subr.mxu0 0.0
    %655 = vmatpush1.msra.mxu0 %v596
    %656 = vmatprep.subr.mxu0 0.0
    %657 = vmatpush2.msra.mxu0 0.0
    %658 = vmatprep.subr.mxu0 0.0
    %659 = vmatpush2.msra.mxu0 0.0
    %660 = vmatprep.subr.mxu0 0.0
    %661 = vmatpush2.msra.mxu0 0.0
    %662 = vmatprep.subr.mxu0 0.0
    %663 = vmatpush2.msra.mxu0 0.0
    %664 = vmatprep.subr.mxu0 0.0
    %665 = vmatpush2.msra.mxu0 0.0
    %666 = vmatprep.subr.mxu0 0.0
    %667 = vmatpush2.msra.mxu0 0.0
    %668 = vmatprep.subr.mxu0 0.0
    %669 = vmatpush2.msra.mxu0 0.0
    %670 = vmatprep.subr.mxu0 0.0
    %671 = vmatpush2.msra.mxu0 0.0
    %672 = vmatprep.subr.mxu0 0.0
    %673 = vmatpush2.msra.mxu0 0.0
    %674 = vmatprep.subr.mxu0 0.0
    %675 = vmatpush2.msra.mxu0 0.0
    %676 = vmatprep.subr.mxu0 0.0
    %677 = vmatpush2.msra.mxu0 0.0
    %678 = vmatprep.subr.mxu0 0.0
    %679 = vmatpush2.msra.mxu0 0.0
    %680 = vmatprep.subr.mxu0 0.0
    %681 = vmatpush2.msra.mxu0 0.0
    %682 = vmatprep.subr.mxu0 0.0
    %683 = vmatpush2.msra.mxu0 0.0
    %684 = vmatprep.subr.mxu0 0.0
    %685 = vmatpush2.msra.mxu0 0.0
    %686 = vmatprep.subr.mxu0 0.0
    %687 = vmatpush2.msra.mxu0 0.0
    %688 = vmatprep.mubr.f32.mxu0 0.0
    %689 = vmatmul.mubr.f32.gmra.mxu0 %v619
    %v690 = vpop.f32.mrf.mxu0
    %v691 = vadd.f32 %v616, %v690
    %v692 = vpop.f32.mrf.mxu0
    %693 = vmatprep.mubr.f32.mxu0 0.0
    %694 = vmatmul.mubr.f32.gmra.mxu0 %v622
    %v695 = vpop.f32.mrf.mxu0
    %v696 = vadd.f32 %v617, %v695
    %v697 = vpop.f32.mrf.mxu0
    %698 = vdwg.mxu0
    %vm699 = vcmask 523264
    %v700 = vsel %vm699, %v691, -inf
    %701 = vmax.xlane.f32.xlu0 %v700
    %v702 = vpop.xlane.xlu0 %701
    %v703 = vsel %vm699, %v696, -inf
    %704 = vmax.xlane.f32.xlu0 %v703
    %v705 = vpop.xlane.xlu0 %704
    %v706 = vsub.f32 %v691, %v702
    %v707 = vsub.f32 %v696, %v705
    %v708 = vmul.f32 %v706, 1.442695
    %v709 = vpow.pop %v708
    %v710 = vmul.f32 %v707, 1.442695
    %v711 = vpow.pop %v710
    %v712 = vld [vmem:[%s20] sm:$0xff]
    %v713 = vld [vmem:[%s20 + $0x8] sm:$0xff]
    %v714 = vld [vmem:[%s20 + $0x10] sm:$0xff]
    %v715 = vld [vmem:[%s20 + $0x18] sm:$0xff]
    %v716 = vld [vmem:[%s20 + $0x20] sm:$0xff]
    %v717 = vld [vmem:[%s20 + $0x28] sm:$0xff]
    %v718 = vld [vmem:[%s20 + $0x30] sm:$0xff]
    %v719 = vld [vmem:[%s20 + $0x38] sm:$0xff]
    %v721 = vsel %vm699, %v709, 0
    %v724 = vsel %vm699, %v711, 0
    %726 = vmatprep.subr.mxu0 0.0
    %727 = vmatpush1.msra.mxu0 0.0
    %728 = vmatprep.subr.mxu0 0.0
    %729 = vmatpush1.msra.mxu0 0.0
    %730 = vmatprep.subr.mxu0 0.0
    %731 = vmatpush1.msra.mxu0 0.0
    %732 = vmatprep.subr.mxu0 0.0
    %733 = vmatpush1.msra.mxu0 0.0
    %734 = vmatprep.subr.mxu0 0.0
    %735 = vmatpush1.msra.mxu0 0.0
    %736 = vmatprep.subr.mxu0 0.0
    %737 = vmatpush1.msra.mxu0 0.0
    %738 = vmatprep.subr.mxu0 0.0
    %739 = vmatpush1.msra.mxu0 0.0
    %740 = vmatprep.subr.mxu0 0.0
    %741 = vmatpush1.msra.mxu0 0.0
    %742 = vmatprep.subr.mxu0 0.0
    %743 = vmatpush1.msra.mxu0 %v719
    %744 = vmatprep.subr.mxu0 0.0
    %745 = vmatpush1.msra.mxu0 %v718
    %746 = vmatprep.subr.mxu0 0.0
    %747 = vmatpush1.msra.mxu0 %v717
    %748 = vmatprep.subr.mxu0 0.0
    %749 = vmatpush1.msra.mxu0 %v716
    %750 = vmatprep.subr.mxu0 0.0
    %751 = vmatpush1.msra.mxu0 %v715
    %752 = vmatprep.subr.mxu0 0.0
    %753 = vmatpush1.msra.mxu0 %v714
    %754 = vmatprep.subr.mxu0 0.0
    %755 = vmatpush1.msra.mxu0 %v713
    %756 = vmatprep.subr.mxu0 0.0
    %757 = vmatpush1.msra.mxu0 %v712
    %758 = vmatprep.subr.mxu0 0.0
    %759 = vmatpush2.msra.mxu0 0.0
    %760 = vmatprep.subr.mxu0 0.0
    %761 = vmatpush2.msra.mxu0 0.0
    %762 = vmatprep.subr.mxu0 0.0
    %763 = vmatpush2.msra.mxu0 0.0
    %764 = vmatprep.subr.mxu0 0.0
    %765 = vmatpush2.msra.mxu0 0.0
    %766 = vmatprep.subr.mxu0 0.0
    %767 = vmatpush2.msra.mxu0 0.0
    %768 = vmatprep.subr.mxu0 0.0
    %769 = vmatpush2.msra.mxu0 0.0
    %770 = vmatprep.subr.mxu0 0.0
    %771 = vmatpush2.msra.mxu0 0.0
    %772 = vmatprep.subr.mxu0 0.0
    %773 = vmatpush2.msra.mxu0 0.0
    %774 = vmatprep.subr.mxu0 0.0
    %775 = vmatpush2.msra.mxu0 0.0
    %776 = vmatprep.subr.mxu0 0.0
    %777 = vmatpush2.msra.mxu0 0.0
    %778 = vmatprep.subr.mxu0 0.0
    %779 = vmatpush2.msra.mxu0 0.0
    %780 = vmatprep.subr.mxu0 0.0
    %781 = vmatpush2.msra.mxu0 0.0
    %782 = vmatprep.subr.mxu0 0.0
    %783 = vmatpush2.msra.mxu0 0.0
    %784 = vmatprep.subr.mxu0 0.0
    %785 = vmatpush2.msra.mxu0 0.0
    %786 = vmatprep.subr.mxu0 0.0
    %787 = vmatpush2.msra.mxu0 0.0
    %788 = vmatprep.subr.mxu0 0.0
    %789 = vmatpush2.msra.mxu0 0.0
    %790 = vmatprep.mubr.f32.mxu0 0.0
    %791 = vmatmul.mubr.f32.gmra.mxu0 %v721
    %v792 = vpop.f32.mrf.mxu0
    %v793 = vadd.f32 0.0, %v792
    %v794 = vpop.f32.mrf.mxu0
    %795 = vmatprep.mubr.f32.mxu0 0.0
    %796 = vmatmul.mubr.f32.gmra.mxu0 %v724
    %v797 = vpop.f32.mrf.mxu0
    %v798 = vadd.f32 0.0, %v797
    %v799 = vpop.f32.mrf.mxu0
    %800 = vdwg.mxu0
    %v801 = vrcp.pop %v793
    %v802 = vrcp.pop %v798
    %v803 = vmul.f32 %v709, %v801
    %v804 = vmul.f32 %v711, %v802
    %v806 = vsel %vm699, %v803, 0
    %v809 = vsel %vm699, %v804, 0
    %811 = vmatprep.subr.mxu0 0.0
    %812 = vmatpush1.msra.mxu0 0.0
    %813 = vmatprep.subr.mxu0 0.0
    %814 = vmatpush1.msra.mxu0 0.0
    %815 = vmatprep.subr.mxu0 0.0
    %816 = vmatpush1.msra.mxu0 0.0
    %817 = vmatprep.subr.mxu0 0.0
    %818 = vmatpush1.msra.mxu0 0.0
    %819 = vmatprep.subr.mxu0 0.0
    %820 = vmatpush1.msra.mxu0 0.0
    %821 = vmatprep.subr.mxu0 0.0
    %822 = vmatpush1.msra.mxu0 0.0
    %823 = vmatprep.subr.mxu0 0.0
    %824 = vmatpush1.msra.mxu0 0.0
    %825 = vmatprep.subr.mxu0 0.0
    %826 = vmatpush1.msra.mxu0 0.0
    %827 = vmatprep.subr.mxu0 0.0
    %828 = vmatpush1.msra.mxu0 %v615
    %829 = vmatprep.subr.mxu0 0.0
    %830 = vmatpush1.msra.mxu0 %v614
    %831 = vmatprep.subr.mxu0 0.0
    %832 = vmatpush1.msra.mxu0 %v613
    %833 = vmatprep.subr.mxu0 0.0
    %834 = vmatpush1.msra.mxu0 %v612
    %835 = vmatprep.subr.mxu0 0.0
    %836 = vmatpush1.msra.mxu0 %v611
    %837 = vmatprep.subr.mxu0 0.0
    %838 = vmatpush1.msra.mxu0 %v610
    %839 = vmatprep.subr.mxu0 0.0
    %840 = vmatpush1.msra.mxu0 %v609
    %841 = vmatprep.subr.mxu0 0.0
    %842 = vmatpush1.msra.mxu0 %v608
    %843 = vmatprep.subr.mxu0 0.0
    %844 = vmatpush2.msra.mxu0 0.0
    %845 = vmatprep.subr.mxu0 0.0
    %846 = vmatpush2.msra.mxu0 0.0
    %847 = vmatprep.subr.mxu0 0.0
    %848 = vmatpush2.msra.mxu0 0.0
    %849 = vmatprep.subr.mxu0 0.0
    %850 = vmatpush2.msra.mxu0 0.0
    %851 = vmatprep.subr.mxu0 0.0
    %852 = vmatpush2.msra.mxu0 0.0
    %853 = vmatprep.subr.mxu0 0.0
    %854 = vmatpush2.msra.mxu0 0.0
    %855 = vmatprep.subr.mxu0 0.0
    %856 = vmatpush2.msra.mxu0 0.0
    %857 = vmatprep.subr.mxu0 0.0
    %858 = vmatpush2.msra.mxu0 0.0
    %859 = vmatprep.subr.mxu0 0.0
    %860 = vmatpush2.msra.mxu0 0.0
    %861 = vmatprep.subr.mxu0 0.0
    %862 = vmatpush2.msra.mxu0 0.0
    %863 = vmatprep.subr.mxu0 0.0
    %864 = vmatpush2.msra.mxu0 0.0
    %865 = vmatprep.subr.mxu0 0.0
    %866 = vmatpush2.msra.mxu0 0.0
    %867 = vmatprep.subr.mxu0 0.0
    %868 = vmatpush2.msra.mxu0 0.0
    %869 = vmatprep.subr.mxu0 0.0
    %870 = vmatpush2.msra.mxu0 0.0
    %871 = vmatprep.subr.mxu0 0.0
    %872 = vmatpush2.msra.mxu0 0.0
    %873 = vmatprep.subr.mxu0 0.0
    %874 = vmatpush2.msra.mxu0 0.0
    %875 = vmatprep.mubr.f32.mxu0 0.0
    %876 = vmatmul.mubr.f32.gmra.mxu0 %v806
    %v877 = vpop.f32.mrf.mxu0
    %v878 = vadd.f32 0.0, %v877
    %v879 = vpop.f32.mrf.mxu0
    %880 = vmatprep.mubr.f32.mxu0 0.0
    %881 = vmatmul.mubr.f32.gmra.mxu0 %v809
    %v882 = vpop.f32.mrf.mxu0
    %v883 = vadd.f32 0.0, %v882
    %v884 = vpop.f32.mrf.mxu0
    %885 = vdwg.mxu0
    %v886 = vld [vmem:[#allocation10] sm:$0xff]
    %v887 = vld [vmem:[#allocation10 + $0x8] sm:$0xff]
    %v888 = vld [vmem:[#allocation10 + $0x10] sm:$0xff]
    %v889 = vld [vmem:[#allocation10 + $0x18] sm:$0xff]
    %v890 = vld [vmem:[#allocation11] sm:$0x1]
    %v892 = vlaneseq
    %v893 = vshrl.u32 %v892, 7
    %v894 = vsub.s32 0, %v893
    %v895 = vrot.slane %v890, %v894
    %v898 = vsel %vm252, %v878, 0
    %v901 = vsel %vm252, %v883, 0
    %903 = vmatprep.subr.mxu0 0.0
    %904 = vmatpush1.msra.mxu0 0.0
    %905 = vmatprep.subr.mxu0 0.0
    %906 = vmatpush1.msra.mxu0 0.0
    %907 = vmatprep.subr.mxu0 0.0
    %908 = vmatpush1.msra.mxu0 0.0
    %909 = vmatprep.subr.mxu0 0.0
    %910 = vmatpush1.msra.mxu0 0.0
    %911 = vmatprep.subr.mxu0 0.0
    %912 = vmatpush1.msra.mxu0 0.0
    %913 = vmatprep.subr.mxu0 0.0
    %914 = vmatpush1.msra.mxu0 0.0
    %915 = vmatprep.subr.mxu0 0.0
    %916 = vmatpush1.msra.mxu0 0.0
    %917 = vmatprep.subr.mxu0 0.0
    %918 = vmatpush1.msra.mxu0 0.0
    %919 = vmatprep.subr.mxu0 0.0
    %920 = vmatpush1.msra.mxu0 0.0
    %921 = vmatprep.subr.mxu0 0.0
    %922 = vmatpush1.msra.mxu0 0.0
    %923 = vmatprep.subr.mxu0 0.0
    %924 = vmatpush1.msra.mxu0 0.0
    %925 = vmatprep.subr.mxu0 0.0
    %926 = vmatpush1.msra.mxu0 0.0
    %927 = vmatprep.subr.mxu0 0.0
    %928 = vmatpush1.msra.mxu0 %v889
    %929 = vmatprep.subr.mxu0 0.0
    %930 = vmatpush1.msra.mxu0 %v888
    %931 = vmatprep.subr.mxu0 0.0
    %932 = vmatpush1.msra.mxu0 %v887
    %933 = vmatprep.subr.mxu0 0.0
    %934 = vmatpush1.msra.mxu0 %v886
    %935 = vmatprep.subr.mxu0 0.0
    %936 = vmatpush2.msra.mxu0 0.0
    %937 = vmatprep.subr.mxu0 0.0
    %938 = vmatpush2.msra.mxu0 0.0
    %939 = vmatprep.subr.mxu0 0.0
    %940 = vmatpush2.msra.mxu0 0.0
    %941 = vmatprep.subr.mxu0 0.0
    %942 = vmatpush2.msra.mxu0 0.0
    %943 = vmatprep.subr.mxu0 0.0
    %944 = vmatpush2.msra.mxu0 0.0
    %945 = vmatprep.subr.mxu0 0.0
    %946 = vmatpush2.msra.mxu0 0.0
    %947 = vmatprep.subr.mxu0 0.0
    %948 = vmatpush2.msra.mxu0 0.0
    %949 = vmatprep.subr.mxu0 0.0
    %950 = vmatpush2.msra.mxu0 0.0
    %951 = vmatprep.subr.mxu0 0.0
    %952 = vmatpush2.msra.mxu0 0.0
    %953 = vmatprep.subr.mxu0 0.0
    %954 = vmatpush2.msra.mxu0 0.0
    %955 = vmatprep.subr.mxu0 0.0
    %956 = vmatpush2.msra.mxu0 0.0
    %957 = vmatprep.subr.mxu0 0.0
    %958 = vmatpush2.msra.mxu0 0.0
    %959 = vmatprep.subr.mxu0 0.0
    %960 = vmatpush2.msra.mxu0 0.0
    %961 = vmatprep.subr.mxu0 0.0
    %962 = vmatpush2.msra.mxu0 0.0
    %963 = vmatprep.subr.mxu0 0.0
    %964 = vmatpush2.msra.mxu0 0.0
    %965 = vmatprep.subr.mxu0 0.0
    %966 = vmatpush2.msra.mxu0 0.0
    %967 = vmatprep.mubr.f32.mxu0 0.0
    %968 = vmatmul.mubr.f32.gmra.mxu0 %v898
    %v969 = vpop.f32.mrf.mxu0
    %v970 = vadd.f32 %v895, %v969
    %v971 = vpop.f32.mrf.mxu0
    %972 = vmatprep.mubr.f32.mxu0 0.0
    %973 = vmatmul.mubr.f32.gmra.mxu0 %v901
    %v974 = vpop.f32.mrf.mxu0
    %v975 = vadd.f32 %v895, %v974
    %v976 = vpop.f32.mrf.mxu0
    %977 = vdwg.mxu0
    %v978 = vadd.f32 %v239, %v970
    %v979 = vadd.f32 %v240, %v975
    %v980 = vsel %vm252, %v978, 0.0
    %981 = vadd.xlane.f32.xlu0 %v980
    %v982 = vpop.xlane.xlu0 %981
    %v983 = vsel %vm252, %v979, 0.0
    %984 = vadd.xlane.f32.xlu0 %v983
    %v985 = vpop.xlane.xlu0 %984
    %v986 = vrcp.pop 32.0
    %v987 = vmul.f32 %v982, %v986
    %v988 = vmul.f32 %v985, %v986
    %v989 = vsub.f32 %v978, %v987
    %v990 = vsub.f32 %v979, %v988
    %v991 = vmul.f32 %v989, %v989
    %v992 = vmul.f32 %v990, %v990
    %v993 = vsel %vm252, %v991, 0.0
    %994 = vadd.xlane.f32.xlu0 %v993
    %v995 = vpop.xlane.xlu0 %994
    %v996 = vsel %vm252, %v992, 0.0
    %997 = vadd.xlane.f32.xlu0 %v996
    %v998 = vpop.xlane.xlu0 %997
    %v999 = vmul.f32 %v995, %v986
    %v1000 = vmul.f32 %v998, %v986
    %v1001 = vadd.f32 %v999, 1e-05
    %v1002 = vadd.f32 %v1000, 1e-05
    %v1003 = vrsqrt.pop %v1001
    %v1004 = vrsqrt.pop %v1002
    %v1005 = vmul.f32 %v989, %v1003
    %v1006 = vmul.f32 %v990, %v1004
    %v1007 = vld [vmem:[#allocation13] sm:$0x1]
    %v1009 = vlaneseq
    %v1010 = vshrl.u32 %v1009, 7
    %v1011 = vsub.s32 0, %v1010
    %v1012 = vrot.slane %v1007, %v1011
    %v1014 = vmul.f32 %v1005, %v1012
    %v1015 = vmul.f32 %v1006, %v1012
    %v1016 = vld [vmem:[#allocation14] sm:$0x1]
    %v1018 = vlaneseq
    %v1019 = vshrl.u32 %v1018, 7
    %v1020 = vsub.s32 0, %v1019
    %v1021 = vrot.slane %v1016, %v1020
    %v1023 = vadd.f32 %v1014, %v1021
    %v1024 = vadd.f32 %v1015, %v1021
    %v1025 = vld [vmem:[#allocation16] sm:$0xff]
    %v1026 = vld [vmem:[#allocation16 + $0x8] sm:$0xff]
    %v1027 = vld [vmem:[#allocation16 + $0x10] sm:$0xff]
    %v1028 = vld [vmem:[#allocation16 + $0x18] sm:$0xff]
    %v1029 = vld [vmem:[#allocation17] sm:$0x1]
    %v1031 = vlaneseq
    %v1032 = vshrl.u32 %v1031, 7
    %v1033 = vsub.s32 0, %v1032
    %v1034 = vrot.slane %v1029, %v1033
    %v1037 = vsel %vm252, %v1023, 0
    %v1040 = vsel %vm252, %v1024, 0
    %1042 = vmatprep.subr.mxu0 0.0
    %1043 = vmatpush1.msra.mxu0 0.0
    %1044 = vmatprep.subr.mxu0 0.0
    %1045 = vmatpush1.msra.mxu0 0.0
    %1046 = vmatprep.subr.mxu0 0.0
    %1047 = vmatpush1.msra.mxu0 0.0
    %1048 = vmatprep.subr.mxu0 0.0
    %1049 = vmatpush1.msra.mxu0 0.0
    %1050 = vmatprep.subr.mxu0 0.0
    %1051 = vmatpush1.msra.mxu0 0.0
    %1052 = vmatprep.subr.mxu0 0.0
    %1053 = vmatpush1.msra.mxu0 0.0
    %1054 = vmatprep.subr.mxu0 0.0
    %1055 = vmatpush1.msra.mxu0 0.0
    %1056 = vmatprep.subr.mxu0 0.0
    %1057 = vmatpush1.msra.mxu0 0.0
    %1058 = vmatprep.subr.mxu0 0.0
    %1059 = vmatpush1.msra.mxu0 0.0
    %1060 = vmatprep.subr.mxu0 0.0
    %1061 = vmatpush1.msra.mxu0 0.0
    %1062 = vmatprep.subr.mxu0 0.0
    %1063 = vmatpush1.msra.mxu0 0.0
    %1064 = vmatprep.subr.mxu0 0.0
    %1065 = vmatpush1.msra.mxu0 0.0
    %1066 = vmatprep.subr.mxu0 0.0
    %1067 = vmatpush1.msra.mxu0 %v1028
    %1068 = vmatprep.subr.mxu0 0.0
    %1069 = vmatpush1.msra.mxu0 %v1027
    %1070 = vmatprep.subr.mxu0 0.0
    %1071 = vmatpush1.msra.mxu0 %v1026
    %1072 = vmatprep.subr.mxu0 0.0
    %1073 = vmatpush1.msra.mxu0 %v1025
    %1074 = vmatprep.subr.mxu0 0.0
    %1075 = vmatpush2.msra.mxu0 0.0
    %1076 = vmatprep.subr.mxu0 0.0
    %1077 = vmatpush2.msra.mxu0 0.0
    %1078 = vmatprep.subr.mxu0 0.0
    %1079 = vmatpush2.msra.mxu0 0.0
    %1080 = vmatprep.subr.mxu0 0.0
    %1081 = vmatpush2.msra.mxu0 0.0
    %1082 = vmatprep.subr.mxu0 0.0
    %1083 = vmatpush2.msra.mxu0 0.0
    %1084 = vmatprep.subr.mxu0 0.0
    %1085 = vmatpush2.msra.mxu0 0.0
    %1086 = vmatprep.subr.mxu0 0.0
    %1087 = vmatpush2.msra.mxu0 0.0
    %1088 = vmatprep.subr.mxu0 0.0
    %1089 = vmatpush2.msra.mxu0 0.0
    %1090 = vmatprep.subr.mxu0 0.0
    %1091 = vmatpush2.msra.mxu0 0.0
    %1092 = vmatprep.subr.mxu0 0.0
    %1093 = vmatpush2.msra.mxu0 0.0
    %1094 = vmatprep.subr.mxu0 0.0
    %1095 = vmatpush2.msra.mxu0 0.0
    %1096 = vmatprep.subr.mxu0 0.0
    %1097 = vmatpush2.msra.mxu0 0.0
    %1098 = vmatprep.subr.mxu0 0.0
    %1099 = vmatpush2.msra.mxu0 0.0
    %1100 = vmatprep.subr.mxu0 0.0
    %1101 = vmatpush2.msra.mxu0 0.0
    %1102 = vmatprep.subr.mxu0 0.0
    %1103 = vmatpush2.msra.mxu0 0.0
    %1104 = vmatprep.subr.mxu0 0.0
    %1105 = vmatpush2.msra.mxu0 0.0
    %1106 = vmatprep.mubr.f32.mxu0 0.0
    %1107 = vmatmul.mubr.f32.gmra.mxu0 %v1037
    %v1108 = vpop.f32.mrf.mxu0
    %v1109 = vadd.f32 %v1034, %v1108
    %v1110 = vpop.f32.mrf.mxu0
    %1111 = vmatprep.mubr.f32.mxu0 0.0
    %1112 = vmatmul.mubr.f32.gmra.mxu0 %v1040
    %v1113 = vpop.f32.mrf.mxu0
    %v1114 = vadd.f32 %v1034, %v1113
    %v1115 = vpop.f32.mrf.mxu0
    %1116 = vdwg.mxu0
    %v1117 = vmax.f32 %v1109, 0.0
    %v1118 = vmax.f32 %v1114, 0.0
    %v1119 = vld [vmem:[%s13] sm:$0xff]
    %v1120 = vld [vmem:[%s13 + $0x8] sm:$0xff]
    %v1121 = vld [vmem:[%s13 + $0x10] sm:$0xff]
    %v1122 = vld [vmem:[%s13 + $0x18] sm:$0xff]
    %v1123 = vld [vmem:[%s13 + $0x20] sm:$0xff]
    %v1124 = vld [vmem:[%s13 + $0x28] sm:$0xff]
    %v1125 = vld [vmem:[%s13 + $0x30] sm:$0xff]
    %v1126 = vld [vmem:[%s13 + $0x38] sm:$0xff]
    %v1127 = vld [vmem:[#allocation19] sm:$0x1]
    %v1129 = vlaneseq
    %v1130 = vshrl.u32 %v1129, 7
    %v1131 = vsub.s32 0, %v1130
    %v1132 = vrot.slane %v1127, %v1131
    %v1135 = vsel %vm699, %v1117, 0
    %v1138 = vsel %vm699, %v1118, 0
    %1140 = vmatprep.subr.mxu0 0.0
    %1141 = vmatpush1.msra.mxu0 0.0
    %1142 = vmatprep.subr.mxu0 0.0
    %1143 = vmatpush1.msra.mxu0 0.0
    %1144 = vmatprep.subr.mxu0 0.0
    %1145 = vmatpush1.msra.mxu0 0.0
    %1146 = vmatprep.subr.mxu0 0.0
    %1147 = vmatpush1.msra.mxu0 0.0
    %1148 = vmatprep.subr.mxu0 0.0
    %1149 = vmatpush1.msra.mxu0 0.0
    %1150 = vmatprep.subr.mxu0 0.0
    %1151 = vmatpush1.msra.mxu0 0.0
    %1152 = vmatprep.subr.mxu0 0.0
    %1153 = vmatpush1.msra.mxu0 0.0
    %1154 = vmatprep.subr.mxu0 0.0
    %1155 = vmatpush1.msra.mxu0 0.0
    %1156 = vmatprep.subr.mxu0 0.0
    %1157 = vmatpush1.msra.mxu0 %v1126
    %1158 = vmatprep.subr.mxu0 0.0
    %1159 = vmatpush1.msra.mxu0 %v1125
    %1160 = vmatprep.subr.mxu0 0.0
    %1161 = vmatpush1.msra.mxu0 %v1124
    %1162 = vmatprep.subr.mxu0 0.0
    %1163 = vmatpush1.msra.mxu0 %v1123
    %1164 = vmatprep.subr.mxu0 0.0
    %1165 = vmatpush1.msra.mxu0 %v1122
    %1166 = vmatprep.subr.mxu0 0.0
    %1167 = vmatpush1.msra.mxu0 %v1121
    %1168 = vmatprep.subr.mxu0 0.0
    %1169 = vmatpush1.msra.mxu0 %v1120
    %1170 = vmatprep.subr.mxu0 0.0
    %1171 = vmatpush1.msra.mxu0 %v1119
    %1172 = vmatprep.subr.mxu0 0.0
    %1173 = vmatpush2.msra.mxu0 0.0
    %1174 = vmatprep.subr.mxu0 0.0
    %1175 = vmatpush2.msra.mxu0 0.0
    %1176 = vmatprep.subr.mxu0 0.0
    %1177 = vmatpush2.msra.mxu0 0.0
    %1178 = vmatprep.subr.mxu0 0.0
    %1179 = vmatpush2.msra.mxu0 0.0
    %1180 = vmatprep.subr.mxu0 0.0
    %1181 = vmatpush2.msra.mxu0 0.0
    %1182 = vmatprep.subr.mxu0 0.0
    %1183 = vmatpush2.msra.mxu0 0.0
    %1184 = vmatprep.subr.mxu0 0.0
    %1185 = vmatpush2.msra.mxu0 0.0
    %1186 = vmatprep.subr.mxu0 0.0
    %1187 = vmatpush2.msra.mxu0 0.0
    %1188 = vmatprep.subr.mxu0 0.0
    %1189 = vmatpush2.msra.mxu0 0.0
    %1190 = vmatprep.subr.mxu0 0.0
    %1191 = vmatpush2.msra.mxu0 0.0
    %1192 = vmatprep.subr.mxu0 0.0
    %1193 = vmatpush2.msra.mxu0 0.0
    %1194 = vmatprep.subr.mxu0 0.0
    %1195 = vmatpush2.msra.mxu0 0.0
    %1196 = vmatprep.subr.mxu0 0.0
    %1197 = vmatpush2.msra.mxu0 0.0
    %1198 = vmatprep.subr.mxu0 0.0
    %1199 = vmatpush2.msra.mxu0 0.0
    %1200 = vmatprep.subr.mxu0 0.0
    %1201 = vmatpush2.msra.mxu0 0.0
    %1202 = vmatprep.subr.mxu0 0.0
    %1203 = vmatpush2.msra.mxu0 0.0
    %1204 = vmatprep.mubr.f32.mxu0 0.0
    %1205 = vmatmul.mubr.f32.gmra.mxu0 %v1135
    %v1206 = vpop.f32.mrf.mxu0
    %v1207 = vadd.f32 %v1132, %v1206
    %v1208 = vpop.f32.mrf.mxu0
    %1209 = vmatprep.mubr.f32.mxu0 0.0
    %1210 = vmatmul.mubr.f32.gmra.mxu0 %v1138
    %v1211 = vpop.f32.mrf.mxu0
    %v1212 = vadd.f32 %v1132, %v1211
    %v1213 = vpop.f32.mrf.mxu0
    %1214 = vdwg.mxu0
    %v1215 = vadd.f32 %v1023, %v1207
    %v1216 = vadd.f32 %v1024, %v1212
    %v1217 = vsel %vm252, %v1215, 0.0
    %1218 = vadd.xlane.f32.xlu0 %v1217
    %v1219 = vpop.xlane.xlu0 %1218
    %v1220 = vsel %vm252, %v1216, 0.0
    %1221 = vadd.xlane.f32.xlu0 %v1220
    %v1222 = vpop.xlane.xlu0 %1221
    %v1223 = vmul.f32 %v1219, %v986
    %v1224 = vmul.f32 %v1222, %v986
    %v1225 = vsub.f32 %v1215, %v1223
    %v1226 = vsub.f32 %v1216, %v1224
    %v1227 = vmul.f32 %v1225, %v1225
    %v1228 = vmul.f32 %v1226, %v1226
    %v1229 = vsel %vm252, %v1227, 0.0
    %1230 = vadd.xlane.f32.xlu0 %v1229
    %v1231 = vpop.xlane.xlu0 %1230
    %v1232 = vsel %vm252, %v1228, 0.0
    %1233 = vadd.xlane.f32.xlu0 %v1232
    %v1234 = vpop.xlane.xlu0 %1233
    %v1235 = vmul.f32 %v1231, %v986
    %v1236 = vmul.f32 %v1234, %v986
    %v1237 = vadd.f32 %v1235, 1e-05
    %v1238 = vadd.f32 %v1236, 1e-05
    %v1239 = vrsqrt.pop %v1237
    %v1240 = vrsqrt.pop %v1238
    %v1241 = vmul.f32 %v1225, %v1239
    %v1242 = vmul.f32 %v1226, %v1240
    %v1243 = vld [vmem:[#allocation20] sm:$0x1]
    %v1245 = vlaneseq
    %v1246 = vshrl.u32 %v1245, 7
    %v1247 = vsub.s32 0, %v1246
    %v1248 = vrot.slane %v1243, %v1247
    %v1250 = vmul.f32 %v1241, %v1248
    %v1251 = vmul.f32 %v1242, %v1248
    %v1252 = vld [vmem:[#allocation22] sm:$0x1]
    %v1254 = vlaneseq
    %v1255 = vshrl.u32 %v1254, 7
    %v1256 = vsub.s32 0, %v1255
    %v1257 = vrot.slane %v1252, %v1256
    %v1259 = vadd.f32 %v1250, %v1257
    %v1260 = vadd.f32 %v1251, %v1257
    %1261 = vst.msk [vmem:[#allocation25] sm:$0xff] %vm252, %v1259
    %1262 = vst.msk [vmem:[#allocation25 + $0x8] sm:$0xff] %vm252, %v1260
    // Predicated region
    $region142: #{tpu_custom_call.1} parent=1 // pred_check
      _
    $region143: #{tpu_custom_call.1} parent=1 // pred_check_branch
      %1264 = sbr.rel (0) target = $region145
    $region144: #{tpu_custom_call.1} parent=1 // pred_region
      %s1266 = ssub.s32 256, 256
      %1267 = vsyncadd [#allocation4], %s1266
      %s1268 = sshll.u32 [#allocation25], 4
      %s1269 = int_to_ptr.vmem [resolvable:$true] %s1268
      %1274 = dma.vmem_to_hbm [thread:$0]  %s1269, 256, %s21, [#allocation4], 128, 128, 8
    $region145: #{tpu_custom_call.1} parent=1 // pred_fallthru
      _
    // Predicated region
    $region146: #{tpu_custom_call.1} parent=1 // pred_check
      _
    $region147: #{tpu_custom_call.1} parent=1 // pred_check_branch
      %1276 = sbr.rel (0) target = $region149
    $region148: #{tpu_custom_call.1} parent=1 // pred_region
      %1277 = dma.done [#allocation4], 256
    $region149: #{tpu_custom_call.1} parent=1 // pred_fallthru
      _
    %1278 = vsyncpa [#allocation3], 1
    %1279 = vsyncpa [#allocation6], 1
    %1280 = vsyncpa [#allocation9], 1
    %1281 = vsyncpa [#allocation12], 1
    %1282 = vsyncpa [#allocation15], 1
    %1283 = vsyncpa [#allocation18], 1
    %1284 = vsyncpa [#allocation21], 1
    %1285 = vsyncpa [#allocation24], 1
    %1286 = vsyncpa [#allocation4], 1

</llo_original>
